<compile_context>
chip_gen: v7x
topology: tpu7x:2x2x1
jax: 0.10.0
libtpu: 0.0.40
codegen_flags: <defaults>
</compile_context>

<pallas_src>
import functools

import jax
import jax.numpy as jnp
from jax.experimental import pallas as pl
from jax.experimental.pallas import tpu as pltpu

LN_EPS = 1e-5
_LANE = 128
_SUBLANE = 8


def _lanes(c):
    return ((c + _LANE - 1) // _LANE) * _LANE


def _round8(r):
    return ((r + _SUBLANE - 1) // _SUBLANE) * _SUBLANE


@functools.lru_cache(maxsize=None)
def _vmem_limit_bytes():
    """Generation-aware scoped-VMEM limit (~65% of physical VMEM per core)."""
    cap = 64 << 20  # conservative default (v7x per-TensorCore VMEM)
    try:
        info = pltpu.get_tpu_info()
        cap = int(getattr(info, "vmem_capacity_bytes", cap) or cap)
    except Exception:
        pass
    return min(int(cap * 0.65), 96 << 20)


def _row_tile(n_rows, per_row_bytes, resident_bytes):
    """Row-tile: multiple of 8, fits the VMEM budget, >=2 grid steps when possible."""
    budget = max(_vmem_limit_bytes() - resident_bytes - (4 << 20), 2 << 20)
    cap = max(_SUBLANE, (budget // max(per_row_bytes, 1)) // _SUBLANE * _SUBLANE)
    ti = min(_round8(n_rows), cap)
    if n_rows >= 2 * _SUBLANE:
        # keep at least 2 grid steps so a v7x megacore can split the work.
        ti = min(ti, _round8(pl.cdiv(n_rows, 2)))
    return ti


def _pad_rows(x, rows):
    pad = rows - x.shape[0]
    if pad <= 0:
        return x
    return jnp.pad(x, [(0, pad)] + [(0, 0)] * (x.ndim - 1))


def _layer_norm(x, gamma, beta):
    """Two-pass LayerNorm (numerically stable; kernels are mem-bound so it's free)."""
    mu = jnp.mean(x, axis=-1, keepdims=True)
    xc = x - mu
    var = jnp.mean(xc * xc, axis=-1, keepdims=True)
    return xc * jax.lax.rsqrt(var + LN_EPS) * gamma + beta


# ---------------------------------------------------------------------------
# Kernel 1: fused target_feat projections + single-activation path
#   W_cat = concat([W_left, W_right, W_single, W_extra_pad]) -> [447, 768]
#   (extra-msa weight zero-padded 64 -> 128 so its output is lane-dense)
# ---------------------------------------------------------------------------
def tf_proj_kernel(tf_ref, wcat_ref, prev_s_ref, g_ref, b_ref, wps_ref,
                   left_ref, right_ref, single_ref, ext_ref):
    cp = left_ref.shape[-1]       # 128
    cs = single_ref.shape[-1]     # 384
    proj = jnp.dot(tf_ref[...], wcat_ref[...],
                   preferred_element_type=jnp.float32)          # [ti, 768]
    left_ref[...] = proj[:, :cp]
    right_ref[...] = proj[:, cp:2 * cp]
    ln = _layer_norm(prev_s_ref[...], g_ref[...], b_ref[...])
    single_ref[...] = proj[:, 2 * cp:2 * cp + cs] + jnp.dot(
        ln, wps_ref[...], preferred_element_type=jnp.float32)
    ext_ref[...] = proj[:, 2 * cp + cs:]


def tf_projections(target_feat, w_left_t, w_right_t, w_single_t, w_extra_t,
                   prev_single, ln_g, ln_b, w_prev_single_t):
    n, ct = target_feat.shape
    cp = w_left_t.shape[1]
    cs = w_single_t.shape[1]
    ce = w_extra_t.shape[1]
    ce_pad = _lanes(ce)                                     # 64 -> 128 (lane-dense output)
    w_extra_pad = jnp.pad(w_extra_t, ((0, 0), (0, ce_pad - ce)))
    w_cat = jnp.concatenate([w_left_t, w_right_t, w_single_t, w_extra_pad], axis=1)
    c_out = w_cat.shape[1]

    resident = 2 * 4 * (_round8(ct) * _lanes(c_out) + _round8(cs) * _lanes(cs)
                        + 2 * _SUBLANE * _lanes(cs))
    per_row = (2 * 4 * (_lanes(ct) + _lanes(cs) + _lanes(c_out))   # streamed, double-buffered
               + 2 * 4 * _lanes(c_out))                            # in-kernel temporaries
    ti = _row_tile(n, per_row, resident)
    n_pad = pl.cdiv(n, ti) * ti
    tf_p = _pad_rows(target_feat, n_pad)
    ps_p = _pad_rows(prev_single, n_pad)

    row = lambda i: (i, 0)
    fix = lambda i: (0, 0)
    left, right, single, ext = pl.pallas_call(
        tf_proj_kernel,
        out_shape=(jax.ShapeDtypeStruct((n_pad, cp), jnp.float32),
                   jax.ShapeDtypeStruct((n_pad, cp), jnp.float32),
                   jax.ShapeDtypeStruct((n_pad, cs), jnp.float32),
                   jax.ShapeDtypeStruct((n_pad, ce_pad), jnp.float32)),
        grid=(n_pad // ti,),
        in_specs=[
            pl.BlockSpec((ti, ct), row),      # target_feat tile
            pl.BlockSpec((ct, c_out), fix),   # fused projection weights (resident)
            pl.BlockSpec((ti, cs), row),      # prev single tile
            pl.BlockSpec((1, cs), fix),       # LN gamma (resident)
            pl.BlockSpec((1, cs), fix),       # LN beta  (resident)
            pl.BlockSpec((cs, cs), fix),      # prev-single weight (resident)
        ],
        out_specs=(pl.BlockSpec((ti, cp), row), pl.BlockSpec((ti, cp), row),
                   pl.BlockSpec((ti, cs), row), pl.BlockSpec((ti, ce_pad), row)),
        compiler_params=pltpu.CompilerParams(
            dimension_semantics=("parallel",),
            vmem_limit_bytes=_vmem_limit_bytes()),
    )(tf_p, w_cat, ps_p, ln_g, ln_b, w_prev_single_t)
    return left[:n], right[:n], single[:n], ext[:n], ext  # ext (unsliced, lane-dense) reused by msa_embed


# ---------------------------------------------------------------------------
# Kernel 2: pair-activation embedding, tiled over pair rows.
#   Single bf16 streamed input comb = [prev_pair | rel_feat | contact] (N,N,268);
#   LayerNorm only the first 128 channels; project; accumulate into out_ref.
# ---------------------------------------------------------------------------
def pair_embed_kernel(left_ref, right_ref, comb_ref, g_ref, b_ref,
                      wprev_ref, wrest_ref, out_ref):
    ti, n, ck = comb_ref.shape
    cp = out_ref.shape[-1]
    comb = comb_ref[...]                                             # bf16 [prev | rel | bond]
    ln = _layer_norm(comb[..., :cp].astype(jnp.float32),
                     g_ref[...], b_ref[...]).astype(jnp.bfloat16)
    # prev-pair projection + (rel-position & bond) projection: one streamed input,
    # two resident-weight bf16 MXU dots (avoids an in-kernel lane-concat relayout).
    proj = jnp.dot(ln.reshape(ti * n, cp), wprev_ref[...],
                   preferred_element_type=jnp.float32)
    proj += jnp.dot(comb[..., cp:].reshape(ti * n, ck - cp), wrest_ref[...],
                    preferred_element_type=jnp.float32)
    out_ref[...] = proj.reshape(ti, n, cp)
    out_ref[...] += left_ref[...] + right_ref[...]                   # outer sum of projections


def pair_embed(left, right, prev_pair, ln_g, ln_b, w_prev_pair_t,
               rel_feat, w_pos_t, contact, w_bond_row):
    n, _, cp = prev_pair.shape
    # Fold bond + rel-position + prev-pair into ONE bf16 streamed input.
    comb = jnp.concatenate(
        [prev_pair, rel_feat, contact[:, :, None]], axis=-1).astype(jnp.bfloat16)
    ck = comb.shape[-1]
    w_prev_bf = w_prev_pair_t.astype(jnp.bfloat16)                       # [128, 128]
    w_rest_bf = jnp.concatenate([w_pos_t, w_bond_row], axis=0).astype(jnp.bfloat16)  # [140, 128]

    resident = 2 * (n * _lanes(cp) * 4                 # right (resident, f32)
                    + _round8(ck) * _lanes(cp) * 2     # weights (bf16)
                    + 2 * _SUBLANE * _lanes(cp) * 4)   # LN params
    per_row = (2 * (n * _lanes(ck) * 2                 # comb tile (bf16), double-buffered
                    + n * _lanes(cp) * 4               # output tile (f32), double-buffered
                    + _SUBLANE * _lanes(cp) * 4)       # left tile (lane/sublane-padded)
               + 4 * n * _lanes(cp) * 4)               # ~4 tile-equivalents of f32 temporaries
    ti = _row_tile(n, per_row, resident)
    n_pad = pl.cdiv(n, ti) * ti

    left3 = _pad_rows(left, n_pad)[:, None, :]         # [Np, 1, C]
    right3 = right[None, :, :]                         # [1, N, C]  (VMEM-resident)
    comb_p = _pad_rows(comb, n_pad)

    row3 = lambda i: (i, 0, 0)
    fix2 = lambda i: (0, 0)
    fix3 = lambda i: (0, 0, 0)

    out = pl.pallas_call(
        pair_embed_kernel,
        out_shape=jax.ShapeDtypeStruct((n_pad, n, cp), jnp.float32),
        grid=(n_pad // ti,),
        in_specs=[
            pl.BlockSpec((ti, 1, cp), row3),     # left tile
            pl.BlockSpec((1, n, cp), fix3),      # right (resident)
            pl.BlockSpec((ti, n, ck), row3),     # fused [prev|rel|bond] tile (bf16)
            pl.BlockSpec((1, cp), fix2),         # LN gamma (resident)
            pl.BlockSpec((1, cp), fix2),         # LN beta  (resident)
            pl.BlockSpec((cp, cp), fix2),        # prev-pair weight (resident, bf16)
            pl.BlockSpec((ck - cp, cp), fix2),   # rel+bond weight (resident, bf16)
        ],
        out_specs=pl.BlockSpec((ti, n, cp), row3),
        compiler_params=pltpu.CompilerParams(
            dimension_semantics=("parallel",),
            vmem_limit_bytes=_vmem_limit_bytes()),
    )(left3, right3, comb_p, ln_g, ln_b, w_prev_bf, w_rest_bf)
    return out[:n]


# ---------------------------------------------------------------------------
# Kernel 3: MSA-activation embedding, tiled over MSA sequences (bf16 streams)
# ---------------------------------------------------------------------------
def msa_embed_kernel(msa_ref, wm_ref, ext_ref, out_ref):
    ts, n, f = msa_ref.shape
    c = out_ref.shape[-1]
    y = jnp.dot(msa_ref[...].reshape(ts * n, f), wm_ref[...],
                preferred_element_type=jnp.float32)
    out_ref[...] = (y.reshape(ts, n, c) + ext_ref[...][None, :, :c]).astype(out_ref.dtype)


def msa_embed(msa_feat, w_msa_t, ext_pad):
    s, n, f = msa_feat.shape
    c = w_msa_t.shape[1]
    ce_pad = ext_pad.shape[-1]
    msa_bf = msa_feat.astype(jnp.bfloat16)
    w_bf = w_msa_t.astype(jnp.bfloat16)

    resident = 2 * (_round8(f) * _lanes(c) * 2 + n * ce_pad * 4)
    per_row = (2 * (n * _lanes(f) * 2 + n * _lanes(c) * 2)   # streamed in/out (bf16)
               + 2 * n * _lanes(c) * 4)                      # f32 temporaries
    ts = _row_tile(s, per_row, resident)
    s_pad = pl.cdiv(s, ts) * ts
    msa_p = _pad_rows(msa_bf, s_pad)

    out = pl.pallas_call(
        msa_embed_kernel,
        out_shape=jax.ShapeDtypeStruct((s_pad, n, c), jnp.bfloat16),
        grid=(s_pad // ts,),
        in_specs=[
            pl.BlockSpec((ts, n, f), lambda i: (i, 0, 0)),   # msa tile (bf16)
            pl.BlockSpec((f, c), lambda i: (0, 0)),          # w_msa (resident, bf16)
            pl.BlockSpec((n, ce_pad), lambda i: (0, 0)),     # extra-msa act (resident, lane-dense)
        ],
        out_specs=pl.BlockSpec((ts, n, c), lambda i: (i, 0, 0)),
        compiler_params=pltpu.CompilerParams(
            dimension_semantics=("parallel",),
            vmem_limit_bytes=_vmem_limit_bytes()),
    )(msa_p, w_bf, ext_pad)
    return out[:s]


# ---------------------------------------------------------------------------
# Wrapper reproducing the Evoformer.forward embedding pipeline
# ---------------------------------------------------------------------------
def evoformer_forward(params, batch, prev, target_feat):
    # Fused target_feat projections + single-activation path, row-gridded.
    left, right, single_act, _, ext_pad = tf_projections(
        target_feat,
        params['w_left_t'], params['w_right_t'],
        params['w_single_t'], params['w_extra_t'],
        prev['single'], params['prev_single_ln_g'], params['prev_single_ln_b'],
        params['w_prev_single_t'])

    # pair mask is a trivial O(N^2) outer product -> plain XLA.
    mask = batch['mask']
    pair_mask = (mask[:, None] * mask[None, :]).astype(jnp.float32)

    pair_act = pair_embed(
        left, right,
        prev['pair'], params['prev_pair_ln_g'], params['prev_pair_ln_b'],
        params['w_prev_pair_t'],
        batch['rel_feat'], params['w_pos_t'],
        batch['contact'], params['w_bond_row'])

    # TODO(synk): TemplateEmbedding(query_embedding=pair_act, ...) is an
    # undisclosed sub-module and is not reproduced here.

    msa_act = msa_embed(batch['msa_feat'], params['w_msa_t'], ext_pad)
    # TODO(synk): 4x EvoformerBlock msa_stack would update (msa_act, pair_act).
    # TODO(synk): 48x PairformerBlock trunk would update (pair_act, single_act).
    return {'single': single_act, 'pair': pair_act, 'target_feat': target_feat,
            'msa': msa_act, 'pair_mask': pair_mask}


def make_params(key):
    c_target, c_pair, c_rel = 447, 128, 139
    c_msa, c_seq = 64, 384
    ks = jax.random.split(key, 10)

    def w(k, out_c, in_c):
        return (0.02 * jax.random.normal(k, (out_c, in_c), jnp.float32)).T  # [in, out]

    return {
        'w_left_t': w(ks[0], c_pair, c_target),
        'w_right_t': w(ks[1], c_pair, c_target),
        'prev_pair_ln_g': jnp.ones((1, c_pair), jnp.float32),
        'prev_pair_ln_b': jnp.zeros((1, c_pair), jnp.float32),
        'w_prev_pair_t': w(ks[2], c_pair, c_pair),
        'w_pos_t': w(ks[3], c_pair, c_rel),
        'w_bond_row': (0.02 * jax.random.normal(ks[4], (1, c_pair), jnp.float32)),
        'w_msa_t': w(ks[5], c_msa, 34),
        'w_extra_t': w(ks[6], c_msa, c_target),
        'w_single_t': w(ks[7], c_seq, c_target),
        'prev_single_ln_g': jnp.ones((1, c_seq), jnp.float32),
        'prev_single_ln_b': jnp.zeros((1, c_seq), jnp.float32),
        'w_prev_single_t': w(ks[8], c_seq, c_seq),
    }


def _reference(params, batch, prev, target_feat):
    """Pure-JAX f32 reference of the same embedding math (tolerance check)."""
    def ln(x, g, b):
        mu = x.mean(-1, keepdims=True)
        var = ((x - mu) ** 2).mean(-1, keepdims=True)
        return (x - mu) / jnp.sqrt(var + LN_EPS) * g + b

    pair = (target_feat @ params['w_left_t'])[:, None, :] \
         + (target_feat @ params['w_right_t'])[None, :, :]
    pair += ln(prev['pair'], params['prev_pair_ln_g'],
               params['prev_pair_ln_b']) @ params['w_prev_pair_t']
    pair += batch['rel_feat'] @ params['w_pos_t']
    pair += batch['contact'][:, :, None] * params['w_bond_row'][None]
    single = target_feat @ params['w_single_t'] \
           + ln(prev['single'], params['prev_single_ln_g'],
                params['prev_single_ln_b']) @ params['w_prev_single_t']
    msa = batch['msa_feat'] @ params['w_msa_t'] \
        + (target_feat @ params['w_extra_t'])[None]
    mask = batch['mask']
    pmask = mask[:, None] * mask[None, :]
    return pair, pmask, msa, single


if __name__ == "__main__":
    N, S = 16, 8            # tokens, MSA sequences (small synthetic sizes)
    c_target, c_pair, c_rel, c_seq = 447, 128, 139, 384

    key = jax.random.PRNGKey(0)
    kp, k1, k2, k3, k4, k5, k6 = jax.random.split(key, 7)
    params = make_params(kp)

    target_feat = jax.random.normal(k1, (N, c_target), jnp.float32)
    prev = {
        'pair': jax.random.normal(k2, (N, N, c_pair), jnp.float32),
        'single': jax.random.normal(k3, (N, c_seq), jnp.float32),
    }
    contact = (jax.random.uniform(k4, (N, N)) > 0.9).astype(jnp.float32)
    contact = contact.at[0, 0].set(0.0)
    batch = {
        'rel_feat': jax.random.normal(k5, (N, N, c_rel), jnp.float32),
        'contact': contact,
        'mask': jnp.ones((N,), jnp.float32),
        'msa_feat': jax.random.normal(k6, (S, N, 34), jnp.float32),
    }

    out = evoformer_forward(params, batch, prev, target_feat)
    jax.block_until_ready(out)

    assert out['pair'].shape == (N, N, c_pair)
    assert out['single'].shape == (N, c_seq)
    assert out['msa'].shape == (S, N, 64)
    assert out['target_feat'].shape == (N, c_target)
    assert out['pair_mask'].shape == (N, N)

    ref_pair, ref_pmask, ref_msa, ref_single = _reference(params, batch, prev, target_feat)
    tol = dict(atol=3e-2, rtol=3e-2)
    assert jnp.allclose(out['pair'], ref_pair, **tol)
    assert jnp.allclose(out['pair_mask'], ref_pmask, **tol)
    assert jnp.allclose(out['msa'].astype(jnp.float32), ref_msa, **tol)
    assert jnp.allclose(out['single'], ref_single, **tol)

    print("KERNEL_OK")
</pallas_src>

<mosaic_0001>
module attributes {stable_mosaic.version = 11 : i64} {
  func.func @tf_proj_kernel(%arg0: i32, %arg1: memref<8x447xf32, #tpu.memory_space<vmem>>, %arg2: memref<447x768xf32, #tpu.memory_space<vmem>>, %arg3: memref<8x384xf32, #tpu.memory_space<vmem>>, %arg4: memref<1x384xf32, #tpu.memory_space<vmem>>, %arg5: memref<1x384xf32, #tpu.memory_space<vmem>>, %arg6: memref<384x384xf32, #tpu.memory_space<vmem>>, %arg7: memref<8x128xf32, #tpu.memory_space<vmem>>, %arg8: memref<8x128xf32, #tpu.memory_space<vmem>>, %arg9: memref<8x384xf32, #tpu.memory_space<vmem>>, %arg10: memref<8x128xf32, #tpu.memory_space<vmem>>) attributes {dimension_semantics = [#tpu.dimension_semantics<parallel>], iteration_bounds = array<i64: 2>, scalar_prefetch = 0 : i64, scratch_operands = 0 : i64, tpu.core_type = #tpu.core_type<tc>, window_params = [{transform_indices = @transform_0, window_bounds = array<i64: 8, 447>}, {pipeline_mode = #tpu.pipeline_mode<synchronous>, transform_indices = @transform_1, window_bounds = array<i64: 447, 768>}, {transform_indices = @transform_2, window_bounds = array<i64: 8, 384>}, {pipeline_mode = #tpu.pipeline_mode<synchronous>, transform_indices = @transform_3, window_bounds = array<i64: 1, 384>}, {pipeline_mode = #tpu.pipeline_mode<synchronous>, transform_indices = @transform_4, window_bounds = array<i64: 1, 384>}, {pipeline_mode = #tpu.pipeline_mode<synchronous>, transform_indices = @transform_5, window_bounds = array<i64: 384, 384>}, {transform_indices = @transform_6, window_bounds = array<i64: 8, 128>}, {transform_indices = @transform_7, window_bounds = array<i64: 8, 128>}, {transform_indices = @transform_8, window_bounds = array<i64: 8, 384>}, {transform_indices = @transform_9, window_bounds = array<i64: 8, 128>}]} {
    %c0 = arith.constant 0 : index
    %c0_0 = arith.constant 0 : index
    %0 = vector.load %arg1[%c0, %c0_0] : memref<8x447xf32, #tpu.memory_space<vmem>>, vector<8x447xf32>
    %c0_1 = arith.constant 0 : index
    %c0_2 = arith.constant 0 : index
    %1 = vector.load %arg2[%c0_1, %c0_2] : memref<447x768xf32, #tpu.memory_space<vmem>>, vector<447x768xf32>
    %cst = arith.constant dense<0.000000e+00> : vector<8x768xf32>
    %2 = tpu.matmul %0, %1, %cst {dimension_numbers = #tpu.dot_dimension_numbers<[1], [0], [0], [1], [0, 0, 1, 1], [], []>} : vector<8x447xf32>, vector<447x768xf32>, vector<8x768xf32> -> vector<8x768xf32>
    %3 = vector.extract_strided_slice %2 {offsets = [0, 0], sizes = [8, 128], strides = [1, 1]} : vector<8x768xf32> to vector<8x128xf32>
    %c0_3 = arith.constant 0 : index
    %c0_4 = arith.constant 0 : index
    %4 = vector.load %arg7[%c0_3, %c0_4] : memref<8x128xf32, #tpu.memory_space<vmem>>, vector<8x128xf32>
    tpu.vector_store %arg7[%c0_3, %c0_4], %3 {strides = array<i32>} : memref<8x128xf32, #tpu.memory_space<vmem>>, vector<8x128xf32>,
    %5 = vector.extract_strided_slice %2 {offsets = [0, 128], sizes = [8, 128], strides = [1, 1]} : vector<8x768xf32> to vector<8x128xf32>
    %c0_5 = arith.constant 0 : index
    %c0_6 = arith.constant 0 : index
    %6 = vector.load %arg8[%c0_5, %c0_6] : memref<8x128xf32, #tpu.memory_space<vmem>>, vector<8x128xf32>
    tpu.vector_store %arg8[%c0_5, %c0_6], %5 {strides = array<i32>} : memref<8x128xf32, #tpu.memory_space<vmem>>, vector<8x128xf32>,
    %c0_7 = arith.constant 0 : index
    %c0_8 = arith.constant 0 : index
    %7 = vector.load %arg3[%c0_7, %c0_8] : memref<8x384xf32, #tpu.memory_space<vmem>>, vector<8x384xf32>
    %c0_9 = arith.constant 0 : index
    %c0_10 = arith.constant 0 : index
    %8 = vector.load %arg4[%c0_9, %c0_10] : memref<1x384xf32, #tpu.memory_space<vmem>>, vector<1x384xf32>
    %c0_11 = arith.constant 0 : index
    %c0_12 = arith.constant 0 : index
    %9 = vector.load %arg5[%c0_11, %c0_12] : memref<1x384xf32, #tpu.memory_space<vmem>>, vector<1x384xf32>
    %cst_13 = arith.constant dense<0.000000e+00> : vector<8xf32>
    %10 = vector.multi_reduction <add>, %7, %cst_13 [1] : vector<8x384xf32> to vector<8xf32>
    %11 = vector.shape_cast %10 : vector<8xf32> to vector<8x1xf32>
    %cst_14 = arith.constant 3.840000e+02 : f32
    %12 = vector.broadcast %cst_14 : f32 to vector<8x1xf32>
    %13 = arith.divf %11, %12 : vector<8x1xf32>
    %14 = vector.broadcast %13 : vector<8x1xf32> to vector<8x384xf32>
    %15 = arith.subf %7, %14 : vector<8x384xf32>
    %16 = arith.mulf %15, %15 : vector<8x384xf32>
    %cst_15 = arith.constant dense<0.000000e+00> : vector<8xf32>
    %17 = vector.multi_reduction <add>, %16, %cst_15 [1] : vector<8x384xf32> to vector<8xf32>
    %18 = vector.shape_cast %17 : vector<8xf32> to vector<8x1xf32>
    %cst_16 = arith.constant 3.840000e+02 : f32
    %19 = vector.broadcast %cst_16 : f32 to vector<8x1xf32>
    %20 = arith.divf %18, %19 : vector<8x1xf32>
    %cst_17 = arith.constant 9.99999974E-6 : f32
    %21 = vector.broadcast %cst_17 : f32 to vector<8x1xf32>
    %22 = arith.addf %20, %21 : vector<8x1xf32>
    %23 = math.rsqrt %22 : vector<8x1xf32>
    %24 = vector.broadcast %23 : vector<8x1xf32> to vector<8x384xf32>
    %25 = arith.mulf %15, %24 : vector<8x384xf32>
    %26 = vector.broadcast %8 : vector<1x384xf32> to vector<8x384xf32>
    %27 = arith.mulf %25, %26 : vector<8x384xf32>
    %28 = vector.broadcast %9 : vector<1x384xf32> to vector<8x384xf32>
    %29 = arith.addf %27, %28 : vector<8x384xf32>
    %30 = vector.extract_strided_slice %2 {offsets = [0, 256], sizes = [8, 384], strides = [1, 1]} : vector<8x768xf32> to vector<8x384xf32>
    %c0_18 = arith.constant 0 : index
    %c0_19 = arith.constant 0 : index
    %31 = vector.load %arg6[%c0_18, %c0_19] : memref<384x384xf32, #tpu.memory_space<vmem>>, vector<384x384xf32>
    %cst_20 = arith.constant dense<0.000000e+00> : vector<8x384xf32>
    %32 = tpu.matmul %29, %31, %cst_20 {dimension_numbers = #tpu.dot_dimension_numbers<[1], [0], [0], [1], [0, 0, 1, 1], [], []>} : vector<8x384xf32>, vector<384x384xf32>, vector<8x384xf32> -> vector<8x384xf32>
    %33 = arith.addf %30, %32 : vector<8x384xf32>
    %c0_21 = arith.constant 0 : index
    %c0_22 = arith.constant 0 : index
    %34 = vector.load %arg9[%c0_21, %c0_22] : memref<8x384xf32, #tpu.memory_space<vmem>>, vector<8x384xf32>
    tpu.vector_store %arg9[%c0_21, %c0_22], %33 {strides = array<i32>} : memref<8x384xf32, #tpu.memory_space<vmem>>, vector<8x384xf32>,
    %35 = vector.extract_strided_slice %2 {offsets = [0, 640], sizes = [8, 128], strides = [1, 1]} : vector<8x768xf32> to vector<8x128xf32>
    %c0_23 = arith.constant 0 : index
    %c0_24 = arith.constant 0 : index
    %36 = vector.load %arg10[%c0_23, %c0_24] : memref<8x128xf32, #tpu.memory_space<vmem>>, vector<8x128xf32>
    tpu.vector_store %arg10[%c0_23, %c0_24], %35 {strides = array<i32>} : memref<8x128xf32, #tpu.memory_space<vmem>>, vector<8x128xf32>,
    return
  }
  func.func @transform_0(%arg0: i32) -> (i32, i32) {
    %c0_i32 = arith.constant 0 : i32
    %c0_i32_0 = arith.constant 0 : i32
    return %arg0, %c0_i32 : i32, i32
  }
  func.func @transform_1(%arg0: i32) -> (i32, i32) {
    %c0_i32 = arith.constant 0 : i32
    %c0_i32_0 = arith.constant 0 : i32
    %c0_i32_1 = arith.constant 0 : i32
    return %c0_i32, %c0_i32_0 : i32, i32
  }
  func.func @transform_2(%arg0: i32) -> (i32, i32) {
    %c0_i32 = arith.constant 0 : i32
    %c0_i32_0 = arith.constant 0 : i32
    return %arg0, %c0_i32 : i32, i32
  }
  func.func @transform_3(%arg0: i32) -> (i32, i32) {
    %c0_i32 = arith.constant 0 : i32
    %c0_i32_0 = arith.constant 0 : i32
    %c0_i32_1 = arith.constant 0 : i32
    return %c0_i32, %c0_i32_0 : i32, i32
  }
  func.func @transform_4(%arg0: i32) -> (i32, i32) {
    %c0_i32 = arith.constant 0 : i32
    %c0_i32_0 = arith.constant 0 : i32
    %c0_i32_1 = arith.constant 0 : i32
    return %c0_i32, %c0_i32_0 : i32, i32
  }
  func.func @transform_5(%arg0: i32) -> (i32, i32) {
    %c0_i32 = arith.constant 0 : i32
    %c0_i32_0 = arith.constant 0 : i32
    %c0_i32_1 = arith.constant 0 : i32
    return %c0_i32, %c0_i32_0 : i32, i32
  }
  func.func @transform_6(%arg0: i32) -> (i32, i32) {
    %c0_i32 = arith.constant 0 : i32
    %c0_i32_0 = arith.constant 0 : i32
    return %arg0, %c0_i32 : i32, i32
  }
  func.func @transform_7(%arg0: i32) -> (i32, i32) {
    %c0_i32 = arith.constant 0 : i32
    %c0_i32_0 = arith.constant 0 : i32
    return %arg0, %c0_i32 : i32, i32
  }
  func.func @transform_8(%arg0: i32) -> (i32, i32) {
    %c0_i32 = arith.constant 0 : i32
    %c0_i32_0 = arith.constant 0 : i32
    return %arg0, %c0_i32 : i32, i32
  }
  func.func @transform_9(%arg0: i32) -> (i32, i32) {
    %c0_i32 = arith.constant 0 : i32
    %c0_i32_0 = arith.constant 0 : i32
    return %arg0, %c0_i32 : i32, i32
  }
}

</mosaic_0001>

<llo_original>
// kernel: tpu_custom_call.1
$region0: #{tpu_custom_call.1}
  #allocation0 [shape = 'u32[]', space=smem, size = 0x4, offset = 0x4, fixed_abs, tag = 'smem constant byte address 0x4 - core index']
  #allocation1 [shape = 'u32[144,128]{1,0:T(1,128)}', space=vmem, size = 0x12000, scoped, tag = 'internal scratch']
  %s0 = inlined_call_operand.hbm [shape: f32[16,447], index: 0, kind: input, shape index: {}]
  %s1 = inlined_call_operand.hbm [shape: f32[447,768], index: 1, kind: input, shape index: {}]
  %s2 = inlined_call_operand.hbm [shape: f32[16,384], index: 2, kind: input, shape index: {}]
  %s3 = inlined_call_operand.hbm [shape: f32[1,384], index: 3, kind: input, shape index: {}]
  %s4 = inlined_call_operand.hbm [shape: f32[1,384], index: 4, kind: input, shape index: {}]
  %s5 = inlined_call_operand.hbm [shape: f32[384,384], index: 5, kind: input, shape index: {}]
  %s6 = inlined_call_operand.hbm [shape: f32[16,128], index: 6, kind: output, shape index: {0}]
  %s7 = inlined_call_operand.hbm [shape: f32[16,128], index: 7, kind: output, shape index: {1}]
  %s8 = inlined_call_operand.hbm [shape: f32[16,384], index: 8, kind: output, shape index: {2}]
  %s9 = inlined_call_operand.hbm [shape: f32[16,128], index: 9, kind: output, shape index: {3}]
  %10 = xla_tuple %s6, %s7, %s8, %s9
  %s11 = sld [smem:[#allocation0]]
  $region105: #{tpu_custom_call.1} parent=0
    _
  %s13 = ssub.s32 1, %s11
  %s14 = scalar_select 0, %s13, %s11
  $region1: #{tpu_custom_call.1} parent=0
    #allocation2 [shape = 'u8[32768]{0}', space=vmem, size = 0x8000, scoped, tag = 'input window, operand 0']
    #allocation3 [shape = 's32[2]{0}', space=sflag, size = 0x8, scoped, tag = 'scoped memory for tpu_custom_call.1']
    #allocation4 [shape = 's32[2]{0}', space=sflag, size = 0x8, scoped, tag = 'scoped memory for tpu_custom_call.1']
    #allocation5 [shape = 'u8[1376256]{0}', space=vmem, size = 0x150000, scoped, tag = 'input window, operand 1, single buffered']
    #allocation6 [shape = 's32[1]{0}', space=sflag, size = 0x4, scoped, tag = 'scoped memory for tpu_custom_call.1']
    #allocation7 [shape = 'u8[24576]{0}', space=vmem, size = 0x6000, scoped, tag = 'input window, operand 2']
    #allocation8 [shape = 'u8[1536]{0}', space=vmem, size = 0x800, scoped, tag = 'input window, operand 3, single buffered']
    #allocation9 [shape = 'u8[1536]{0}', space=vmem, size = 0x800, scoped, tag = 'input window, operand 4, single buffered']
    #allocation10 [shape = 's32[1]{0}', space=sflag, size = 0x4, scoped, tag = 'scoped memory for tpu_custom_call.1']
    #allocation11 [shape = 'u8[589824]{0}', space=vmem, size = 0x90000, scoped, tag = 'input window, operand 5, single buffered']
    #allocation12 [shape = 'u8[8192]{0}', space=vmem, size = 0x2000, scoped, tag = 'output window, operand 0']
    #allocation13 [shape = 'u8[8192]{0}', space=vmem, size = 0x2000, scoped, tag = 'output window, operand 1']
    #allocation14 [shape = 's32[2]{0}', space=sflag, size = 0x8, scoped, tag = 'scoped memory for tpu_custom_call.1']
    #allocation15 [shape = 'u8[24576]{0}', space=vmem, size = 0x6000, scoped, tag = 'output window, operand 2']
    #allocation16 [shape = 'u8[8192]{0}', space=vmem, size = 0x2000, scoped, tag = 'output window, operand 3']
    #allocation17 [shape = 's32[2]{0}', space=sflag, size = 0x8, scoped, tag = 'scoped memory for tpu_custom_call.1']
    %15 = vsyncpa [#allocation3], 0
    %s16 = scalar_lea.sflag [#allocation3], 1
    %17 = vsyncpa %s16, 0
    %18 = vsyncpa [#allocation6], 0
    %19 = vsyncpa [#allocation10], 0
    %20 = vsyncpa [#allocation4], 0
    %s21 = scalar_lea.sflag [#allocation4], 1
    %22 = vsyncpa %s21, 0
    %23 = vsyncpa [#allocation14], 0
    %s24 = scalar_lea.sflag [#allocation14], 1
    %25 = vsyncpa %s24, 0
    %26 = vsyncpa [#allocation17], 0
    %s27 = scalar_lea.sflag [#allocation17], 1
    %28 = vsyncpa %s27, 0
    loop: start=0, step=1, limit=4
    $region2: #{tpu_custom_call.1} parent=1 // loop_pre_header
      _
    $region3: #{tpu_custom_call.1} parent=1 // loop_header
      %s30 = sphi 0, %s34
      %p31 = scmp.ge.s32.totalorder %s30, 4
      %s40 = sphi 0, %s42
      %s43 = sphi 0, %s40
      %s44 = sphi 0, %s43
      %s60 = sphi 0, %s44
      %s64 = sphi 0, %s64
      %s66 = sphi 0, %s64
      %s67 = sphi 0, %s66
      %s81 = sphi 0, %s67
      %s87 = sphi 0, %s89
      %s90 = sphi 0, %s87
      %s91 = sphi 0, %s90
      %s107 = sphi 0, %s91
      %s111 = sphi 0, %s111
      %s113 = sphi 0, %s111
      %s114 = sphi 0, %s113
      %s128 = sphi 0, %s114
      %s132 = sphi 0, %s132
      %s134 = sphi 0, %s132
      %s135 = sphi 0, %s134
      %s149 = sphi 0, %s135
      %s153 = sphi 0, %s153
      %s155 = sphi 0, %s153
      %s156 = sphi 0, %s155
      %s170 = sphi 0, %s156
      %s176 = sphi 0, %s178
      %s179 = sphi 0, %s176
      %s180 = sphi 0, %s179
      %s196 = sphi 0, %s180
      %s202 = sphi 0, %s204
      %s205 = sphi 0, %s202
      %s206 = sphi 0, %s205
      %s222 = sphi 0, %s206
      %s228 = sphi 0, %s230
      %s231 = sphi 0, %s228
      %s232 = sphi 0, %s231
      %s248 = sphi 0, %s232
      %s254 = sphi 0, %s256
      %s257 = sphi 0, %s254
      %s258 = sphi 0, %s257
      %s274 = sphi 0, %s258
    $region4: #{tpu_custom_call.1} parent=1 // loop_header_branch
      %33 = sbr.rel (%p31) target = $region8
    $region5: #{tpu_custom_call.1} parent=1 // loop_body
      %s35 = ssub.s32 %s30, 1
      %s36 = ssub.s32 %s30, 2
      %s37 = sadd.s32 %s30, 1
      %s38 = ssub.s32 %s30, %s37
      %p39 = scmp.eq.s32.totalorder %s38, 0
      %s41 = sadd.s32 %s40, 1
      %s42 = scalar_select %p39, %s40, %s41
      %p45 = pneg %p39
      %p46 = scmp.eq.s32.totalorder %s30, 1
      %p47 = por %p45, %p46
      %p48 = scmp.ne.s32.totalorder %s40, %s43
      %p49 = scmp.eq.s32.totalorder %s30, 0
      %p50 = por %p48, %p49
      %p51 = scmp.ne.s32.totalorder %s40, %s43
      %p52 = scmp.eq.s32.totalorder %s35, 1
      %p53 = por %p51, %p52
      %p54 = scmp.ne.s32.totalorder %s43, %s44
      %p55 = scmp.eq.s32.totalorder %s35, 0
      %p56 = por %p54, %p55
      %p57 = scmp.ne.s32.totalorder %s43, %s44
      %p58 = scmp.eq.s32.totalorder %s36, 1
      %p59 = por %p57, %p58
      %p61 = scmp.ne.s32.totalorder %s44, %s60
      %p62 = scmp.eq.s32.totalorder %s36, 0
      %p63 = por %p61, %p62
      %s65 = sadd.s32 %s64, 1
      %p68 = scmp.eq.s32.totalorder %s30, 1
      %p69 = scmp.ne.s32.totalorder %s64, %s66
      %p70 = scmp.eq.s32.totalorder %s30, 0
      %p71 = por %p69, %p70
      %p72 = scmp.ne.s32.totalorder %s64, %s66
      %p73 = scmp.eq.s32.totalorder %s35, 1
      %p74 = por %p72, %p73
      %p75 = scmp.ne.s32.totalorder %s66, %s67
      %p76 = scmp.eq.s32.totalorder %s35, 0
      %p77 = por %p75, %p76
      %p78 = scmp.ne.s32.totalorder %s66, %s67
      %p79 = scmp.eq.s32.totalorder %s36, 1
      %p80 = por %p78, %p79
      %p82 = scmp.ne.s32.totalorder %s67, %s81
      %p83 = scmp.eq.s32.totalorder %s36, 0
      %p84 = por %p82, %p83
      %s85 = ssub.s32 %s30, %s37
      %p86 = scmp.eq.s32.totalorder %s85, 0
      %s88 = sadd.s32 %s87, 1
      %s89 = scalar_select %p86, %s87, %s88
      %p92 = pneg %p86
      %p93 = scmp.eq.s32.totalorder %s30, 1
      %p94 = por %p92, %p93
      %p95 = scmp.ne.s32.totalorder %s87, %s90
      %p96 = scmp.eq.s32.totalorder %s30, 0
      %p97 = por %p95, %p96
      %p98 = scmp.ne.s32.totalorder %s87, %s90
      %p99 = scmp.eq.s32.totalorder %s35, 1
      %p100 = por %p98, %p99
      %p101 = scmp.ne.s32.totalorder %s90, %s91
      %p102 = scmp.eq.s32.totalorder %s35, 0
      %p103 = por %p101, %p102
      %p104 = scmp.ne.s32.totalorder %s90, %s91
      %p105 = scmp.eq.s32.totalorder %s36, 1
      %p106 = por %p104, %p105
      %p108 = scmp.ne.s32.totalorder %s91, %s107
      %p109 = scmp.eq.s32.totalorder %s36, 0
      %p110 = por %p108, %p109
      %s112 = sadd.s32 %s111, 1
      %p115 = scmp.eq.s32.totalorder %s30, 1
      %p116 = scmp.ne.s32.totalorder %s111, %s113
      %p117 = scmp.eq.s32.totalorder %s30, 0
      %p118 = por %p116, %p117
      %p119 = scmp.ne.s32.totalorder %s111, %s113
      %p120 = scmp.eq.s32.totalorder %s35, 1
      %p121 = por %p119, %p120
      %p122 = scmp.ne.s32.totalorder %s113, %s114
      %p123 = scmp.eq.s32.totalorder %s35, 0
      %p124 = por %p122, %p123
      %p125 = scmp.ne.s32.totalorder %s113, %s114
      %p126 = scmp.eq.s32.totalorder %s36, 1
      %p127 = por %p125, %p126
      %p129 = scmp.ne.s32.totalorder %s114, %s128
      %p130 = scmp.eq.s32.totalorder %s36, 0
      %p131 = por %p129, %p130
      %s133 = sadd.s32 %s132, 1
      %p136 = scmp.eq.s32.totalorder %s30, 1
      %p137 = scmp.ne.s32.totalorder %s132, %s134
      %p138 = scmp.eq.s32.totalorder %s30, 0
      %p139 = por %p137, %p138
      %p140 = scmp.ne.s32.totalorder %s132, %s134
      %p141 = scmp.eq.s32.totalorder %s35, 1
      %p142 = por %p140, %p141
      %p143 = scmp.ne.s32.totalorder %s134, %s135
      %p144 = scmp.eq.s32.totalorder %s35, 0
      %p145 = por %p143, %p144
      %p146 = scmp.ne.s32.totalorder %s134, %s135
      %p147 = scmp.eq.s32.totalorder %s36, 1
      %p148 = por %p146, %p147
      %p150 = scmp.ne.s32.totalorder %s135, %s149
      %p151 = scmp.eq.s32.totalorder %s36, 0
      %p152 = por %p150, %p151
      %s154 = sadd.s32 %s153, 1
      %p157 = scmp.eq.s32.totalorder %s30, 1
      %p158 = scmp.ne.s32.totalorder %s153, %s155
      %p159 = scmp.eq.s32.totalorder %s30, 0
      %p160 = por %p158, %p159
      %p161 = scmp.ne.s32.totalorder %s153, %s155
      %p162 = scmp.eq.s32.totalorder %s35, 1
      %p163 = por %p161, %p162
      %p164 = scmp.ne.s32.totalorder %s155, %s156
      %p165 = scmp.eq.s32.totalorder %s35, 0
      %p166 = por %p164, %p165
      %p167 = scmp.ne.s32.totalorder %s155, %s156
      %p168 = scmp.eq.s32.totalorder %s36, 1
      %p169 = por %p167, %p168
      %p171 = scmp.ne.s32.totalorder %s156, %s170
      %p172 = scmp.eq.s32.totalorder %s36, 0
      %p173 = por %p171, %p172
      %s174 = ssub.s32 %s30, %s37
      %p175 = scmp.eq.s32.totalorder %s174, 0
      %s177 = sadd.s32 %s176, 1
      %s178 = scalar_select %p175, %s176, %s177
      %p181 = pneg %p175
      %p182 = scmp.eq.s32.totalorder %s30, 1
      %p183 = por %p181, %p182
      %p184 = scmp.ne.s32.totalorder %s176, %s179
      %p185 = scmp.eq.s32.totalorder %s30, 0
      %p186 = por %p184, %p185
      %p187 = scmp.ne.s32.totalorder %s176, %s179
      %p188 = scmp.eq.s32.totalorder %s35, 1
      %p189 = por %p187, %p188
      %p190 = scmp.ne.s32.totalorder %s179, %s180
      %p191 = scmp.eq.s32.totalorder %s35, 0
      %p192 = por %p190, %p191
      %p193 = scmp.ne.s32.totalorder %s179, %s180
      %p194 = scmp.eq.s32.totalorder %s36, 1
      %p195 = por %p193, %p194
      %p197 = scmp.ne.s32.totalorder %s180, %s196
      %p198 = scmp.eq.s32.totalorder %s36, 0
      %p199 = por %p197, %p198
      %s200 = ssub.s32 %s30, %s37
      %p201 = scmp.eq.s32.totalorder %s200, 0
      %s203 = sadd.s32 %s202, 1
      %s204 = scalar_select %p201, %s202, %s203
      %p207 = pneg %p201
      %p208 = scmp.eq.s32.totalorder %s30, 1
      %p209 = por %p207, %p208
      %p210 = scmp.ne.s32.totalorder %s202, %s205
      %p211 = scmp.eq.s32.totalorder %s30, 0
      %p212 = por %p210, %p211
      %p213 = scmp.ne.s32.totalorder %s202, %s205
      %p214 = scmp.eq.s32.totalorder %s35, 1
      %p215 = por %p213, %p214
      %p216 = scmp.ne.s32.totalorder %s205, %s206
      %p217 = scmp.eq.s32.totalorder %s35, 0
      %p218 = por %p216, %p217
      %p219 = scmp.ne.s32.totalorder %s205, %s206
      %p220 = scmp.eq.s32.totalorder %s36, 1
      %p221 = por %p219, %p220
      %p223 = scmp.ne.s32.totalorder %s206, %s222
      %p224 = scmp.eq.s32.totalorder %s36, 0
      %p225 = por %p223, %p224
      %s226 = ssub.s32 %s30, %s37
      %p227 = scmp.eq.s32.totalorder %s226, 0
      %s229 = sadd.s32 %s228, 1
      %s230 = scalar_select %p227, %s228, %s229
      %p233 = pneg %p227
      %p234 = scmp.eq.s32.totalorder %s30, 1
      %p235 = por %p233, %p234
      %p236 = scmp.ne.s32.totalorder %s228, %s231
      %p237 = scmp.eq.s32.totalorder %s30, 0
      %p238 = por %p236, %p237
      %p239 = scmp.ne.s32.totalorder %s228, %s231
      %p240 = scmp.eq.s32.totalorder %s35, 1
      %p241 = por %p239, %p240
      %p242 = scmp.ne.s32.totalorder %s231, %s232
      %p243 = scmp.eq.s32.totalorder %s35, 0
      %p244 = por %p242, %p243
      %p245 = scmp.ne.s32.totalorder %s231, %s232
      %p246 = scmp.eq.s32.totalorder %s36, 1
      %p247 = por %p245, %p246
      %p249 = scmp.ne.s32.totalorder %s232, %s248
      %p250 = scmp.eq.s32.totalorder %s36, 0
      %p251 = por %p249, %p250
      %s252 = ssub.s32 %s30, %s37
      %p253 = scmp.eq.s32.totalorder %s252, 0
      %s255 = sadd.s32 %s254, 1
      %s256 = scalar_select %p253, %s254, %s255
      %p259 = pneg %p253
      %p260 = scmp.eq.s32.totalorder %s30, 1
      %p261 = por %p259, %p260
      %p262 = scmp.ne.s32.totalorder %s254, %s257
      %p263 = scmp.eq.s32.totalorder %s30, 0
      %p264 = por %p262, %p263
      %p265 = scmp.ne.s32.totalorder %s254, %s257
      %p266 = scmp.eq.s32.totalorder %s35, 1
      %p267 = por %p265, %p266
      %p268 = scmp.ne.s32.totalorder %s257, %s258
      %p269 = scmp.eq.s32.totalorder %s35, 0
      %p270 = por %p268, %p269
      %p271 = scmp.ne.s32.totalorder %s257, %s258
      %p272 = scmp.eq.s32.totalorder %s36, 1
      %p273 = por %p271, %p272
      %p275 = scmp.ne.s32.totalorder %s258, %s274
      %p276 = scmp.eq.s32.totalorder %s36, 0
      %p277 = por %p275, %p276
      %p278 = scmp.le.s32.totalorder 1, %s30
      %p279 = scmp.lt.s32.totalorder %s30, 3
      %p280 = pnand %p278, %p279
      %p281 = pneg %p280
      // Predicated region
      $region9: #{tpu_custom_call.1} parent=5 // pred_check
        _
      $region10: #{tpu_custom_call.1} parent=5 // pred_check_branch
        %283 = sbr.rel (%p280) target = $region12
      $region11: #{tpu_custom_call.1} parent=5 // pred_region
        %s284 = ssub.s32 %s30, 1
        // Predicated region
        $region13: #{tpu_custom_call.1} parent=11 // pred_check
          %p285 = pneg %p77
        $region14: #{tpu_custom_call.1} parent=11 // pred_check_branch
          %287 = sbr.rel (%p285) target = $region16
        $region15: #{tpu_custom_call.1} parent=11 // pred_region
          %s289 = ssub.s32 43008, 43008
          %290 = vsyncadd [#allocation6], %s289
          %s291 = sshll.u32 [#allocation5], 4
          %s292 = int_to_ptr.vmem [resolvable:$true] %s291
          %297 = dma.hbm_to_vmem [thread:$0]  %s1, 43008, %s292, [#allocation6], 768, 768, 48
        $region16: #{tpu_custom_call.1} parent=11 // pred_fallthru
          _
        // Predicated region
        $region17: #{tpu_custom_call.1} parent=11 // pred_check
          %p298 = pneg %p124
        $region18: #{tpu_custom_call.1} parent=11 // pred_check_branch
          %300 = sbr.rel (%p298) target = $region20
        $region19: #{tpu_custom_call.1} parent=11 // pred_region
          %s302 = ssub.s32 48, 48
          %303 = vsyncadd [#allocation6], %s302
          %s305 = sshll.u32 [#allocation8], 4
          %s306 = int_to_ptr.vmem [resolvable:$true] %s305
          %308 = dma.hbm_to_vmem [thread:$0]  %s3, 48, %s306, [#allocation6]
        $region20: #{tpu_custom_call.1} parent=11 // pred_fallthru
          _
        // Predicated region
        $region21: #{tpu_custom_call.1} parent=11 // pred_check
          %p309 = pneg %p145
        $region22: #{tpu_custom_call.1} parent=11 // pred_check_branch
          %311 = sbr.rel (%p309) target = $region24
        $region23: #{tpu_custom_call.1} parent=11 // pred_region
          %s313 = ssub.s32 48, 48
          %314 = vsyncadd [#allocation10], %s313
          %s316 = sshll.u32 [#allocation9], 4
          %s317 = int_to_ptr.vmem [resolvable:$true] %s316
          %319 = dma.hbm_to_vmem [thread:$0]  %s4, 48, %s317, [#allocation10]
        $region24: #{tpu_custom_call.1} parent=11 // pred_fallthru
          _
        // Predicated region
        $region25: #{tpu_custom_call.1} parent=11 // pred_check
          %p320 = pneg %p166
        $region26: #{tpu_custom_call.1} parent=11 // pred_check_branch
          %322 = sbr.rel (%p320) target = $region28
        $region27: #{tpu_custom_call.1} parent=11 // pred_region
          %s324 = ssub.s32 18432, 18432
          %325 = vsyncadd [#allocation10], %s324
          %s326 = sshll.u32 [#allocation11], 4
          %s327 = int_to_ptr.vmem [resolvable:$true] %s326
          %332 = dma.hbm_to_vmem [thread:$0]  %s5, 18432, %s327, [#allocation10], 384, 384, 24
        $region28: #{tpu_custom_call.1} parent=11 // pred_fallthru
          _
      $region12: #{tpu_custom_call.1} parent=5 // pred_fallthru
        _
      %p333 = scmp.lt.s32.totalorder %s30, 2
      // Predicated region
      $region29: #{tpu_custom_call.1} parent=5 // pred_check
        %p334 = pneg %p333
      $region30: #{tpu_custom_call.1} parent=5 // pred_check_branch
        %336 = sbr.rel (%p334) target = $region32
      $region31: #{tpu_custom_call.1} parent=5 // pred_region
        // Predicated region
        $region33: #{tpu_custom_call.1} parent=31 // pred_check
          %p337 = pneg %p50
        $region34: #{tpu_custom_call.1} parent=31 // pred_check_branch
          %339 = sbr.rel (%p337) target = $region36
        $region35: #{tpu_custom_call.1} parent=31 // pred_region
          %s340 = sand.u32 %s30, 1
          %s341 = scalar_lea.sflag [#allocation3], %s340
          %s342 = sand.u32 %s40, 1
          %s343 = smul.addr %s342, 32
          %s344 = scalar_lea.vmem [#allocation2], %s343
          %s346 = ssub.s32 512, 512
          %347 = vsyncadd %s341, %s346
          %s348 = smul.addr %s30, 4
          %s349 = smul.addr %s348, 128
          %s350 = scalar_lea.hbm %s0, %s349
          %s352 = sshll.u32 %s344, 4
          %s353 = int_to_ptr.vmem [resolvable:$true] %s352
          %355 = dma.hbm_to_vmem [thread:$0]  %s350, 512, %s353, %s341
        $region36: #{tpu_custom_call.1} parent=31 // pred_fallthru
          _
        // Predicated region
        $region37: #{tpu_custom_call.1} parent=31 // pred_check
          %p356 = pneg %p97
        $region38: #{tpu_custom_call.1} parent=31 // pred_check_branch
          %358 = sbr.rel (%p356) target = $region40
        $region39: #{tpu_custom_call.1} parent=31 // pred_region
          %s359 = sand.u32 %s30, 1
          %s360 = scalar_lea.sflag [#allocation3], %s359
          %s361 = sand.u32 %s87, 1
          %s362 = smul.addr %s361, 24
          %s363 = scalar_lea.vmem [#allocation7], %s362
          %s365 = ssub.s32 384, 384
          %366 = vsyncadd %s360, %s365
          %s367 = smul.addr %s30, 3
          %s368 = smul.addr %s367, 128
          %s369 = scalar_lea.hbm %s2, %s368
          %s371 = sshll.u32 %s363, 4
          %s372 = int_to_ptr.vmem [resolvable:$true] %s371
          %374 = dma.hbm_to_vmem [thread:$0]  %s369, 384, %s372, %s360
        $region40: #{tpu_custom_call.1} parent=31 // pred_fallthru
          _
      $region32: #{tpu_custom_call.1} parent=5 // pred_fallthru
        _
      %p375 = scmp.le.s32.totalorder 1, %s30
      %p376 = scmp.lt.s32.totalorder %s30, 3
      %p377 = pnand %p375, %p376
      %p378 = pneg %p377
      // Predicated region
      $region41: #{tpu_custom_call.1} parent=5 // pred_check
        _
      $region42: #{tpu_custom_call.1} parent=5 // pred_check_branch
        %380 = sbr.rel (%p377) target = $region44
      $region43: #{tpu_custom_call.1} parent=5 // pred_region
        %s381 = ssub.s32 %s30, 1
        %s382 = sand.u32 %s35, 1
        %s383 = scalar_lea.sflag [#allocation3], %s382
        %s384 = sand.u32 %s43, 1
        %s385 = smul.addr %s384, 32
        %s386 = scalar_lea.vmem [#allocation2], %s385
        // Predicated region
        $region45: #{tpu_custom_call.1} parent=43 // pred_check
          %p387 = pneg %p56
        $region46: #{tpu_custom_call.1} parent=43 // pred_check_branch
          %389 = sbr.rel (%p387) target = $region48
        $region47: #{tpu_custom_call.1} parent=43 // pred_region
          %390 = dma.done %s383, 512
        $region48: #{tpu_custom_call.1} parent=43 // pred_fallthru
          _
        // Predicated region
        $region49: #{tpu_custom_call.1} parent=43 // pred_check
          %p391 = pneg %p77
        $region50: #{tpu_custom_call.1} parent=43 // pred_check_branch
          %393 = sbr.rel (%p391) target = $region52
        $region51: #{tpu_custom_call.1} parent=43 // pred_region
          %394 = dma.done [#allocation6], 43008
        $region52: #{tpu_custom_call.1} parent=43 // pred_fallthru
          _
        %s395 = sand.u32 %s35, 1
        %s396 = scalar_lea.sflag [#allocation3], %s395
        %s397 = sand.u32 %s90, 1
        %s398 = smul.addr %s397, 24
        %s399 = scalar_lea.vmem [#allocation7], %s398
        // Predicated region
        $region53: #{tpu_custom_call.1} parent=43 // pred_check
          %p400 = pneg %p103
        $region54: #{tpu_custom_call.1} parent=43 // pred_check_branch
          %402 = sbr.rel (%p400) target = $region56
        $region55: #{tpu_custom_call.1} parent=43 // pred_region
          %403 = dma.done %s396, 384
        $region56: #{tpu_custom_call.1} parent=43 // pred_fallthru
          _
        // Predicated region
        $region57: #{tpu_custom_call.1} parent=43 // pred_check
          %p404 = pneg %p124
        $region58: #{tpu_custom_call.1} parent=43 // pred_check_branch
          %406 = sbr.rel (%p404) target = $region60
        $region59: #{tpu_custom_call.1} parent=43 // pred_region
          %407 = dma.done [#allocation6], 48
        $region60: #{tpu_custom_call.1} parent=43 // pred_fallthru
          _
        // Predicated region
        $region61: #{tpu_custom_call.1} parent=43 // pred_check
          %p408 = pneg %p145
        $region62: #{tpu_custom_call.1} parent=43 // pred_check_branch
          %410 = sbr.rel (%p408) target = $region64
        $region63: #{tpu_custom_call.1} parent=43 // pred_region
          %411 = dma.done [#allocation10], 48
        $region64: #{tpu_custom_call.1} parent=43 // pred_fallthru
          _
        // Predicated region
        $region65: #{tpu_custom_call.1} parent=43 // pred_check
          %p412 = pneg %p166
        $region66: #{tpu_custom_call.1} parent=43 // pred_check_branch
          %414 = sbr.rel (%p412) target = $region68
        $region67: #{tpu_custom_call.1} parent=43 // pred_region
          %415 = dma.done [#allocation10], 18432
        $region68: #{tpu_custom_call.1} parent=43 // pred_fallthru
          _
        %s416 = sand.u32 %s35, 1
        %s417 = scalar_lea.sflag [#allocation3], %s416
        %s418 = sand.u32 %s43, 1
        %s419 = smul.addr %s418, 32
        %s420 = scalar_lea.vmem [#allocation2], %s419
        %p421 = pneg %p56
        %p422 = pneg %p53
        %p423 = pneg %p77
        %p424 = pneg %p74
        %s425 = sand.u32 %s35, 1
        %s426 = scalar_lea.sflag [#allocation3], %s425
        %s427 = sand.u32 %s90, 1
        %s428 = smul.addr %s427, 24
        %s429 = scalar_lea.vmem [#allocation7], %s428
        %p430 = pneg %p103
        %p431 = pneg %p100
        %p432 = pneg %p124
        %p433 = pneg %p121
        %p434 = pneg %p145
        %p435 = pneg %p142
        %p436 = pneg %p166
        %p437 = pneg %p163
        %p438 = pneg %p192
        %p439 = pneg %p189
        %s440 = sand.u32 %s179, 1
        %s441 = scalar_lea.sflag [#allocation4], %s440
        %s442 = sand.u32 %s179, 1
        %s443 = smul.addr %s442, 8
        %s444 = scalar_lea.vmem [#allocation12], %s443
        %p445 = pneg %p218
        %p446 = pneg %p215
        %s447 = sand.u32 %s35, 1
        %s448 = scalar_lea.sflag [#allocation14], %s447
        %s449 = sand.u32 %s205, 1
        %s450 = smul.addr %s449, 8
        %s451 = scalar_lea.vmem [#allocation13], %s450
        %p452 = pneg %p244
        %p453 = pneg %p241
        %s454 = sand.u32 %s35, 1
        %s455 = scalar_lea.sflag [#allocation14], %s454
        %s456 = sand.u32 %s231, 1
        %s457 = smul.addr %s456, 24
        %s458 = scalar_lea.vmem [#allocation15], %s457
        %p459 = pneg %p270
        %p460 = pneg %p267
        %s461 = sand.u32 %s257, 1
        %s462 = scalar_lea.sflag [#allocation17], %s461
        %s463 = sand.u32 %s257, 1
        %s464 = smul.addr %s463, 8
        %s465 = scalar_lea.vmem [#allocation16], %s464
        %v466 = vld [vmem:[%s386] sm:$0xff]
        %v467 = vld [vmem:[%s386 + $0x8] sm:$0xff]
        %v468 = vld [vmem:[%s386 + $0x10] sm:$0xff]
        %v469 = vld [vmem:[%s386 + $0x18] sm:$0xff]
        %v470 = vld [vmem:[#allocation5] sm:$0xff]
        %v471 = vld [vmem:[#allocation5 + $0x8] sm:$0xff]
        %v472 = vld [vmem:[#allocation5 + $0x10] sm:$0xff]
        %v473 = vld [vmem:[#allocation5 + $0x18] sm:$0xff]
        %v474 = vld [vmem:[#allocation5 + $0x20] sm:$0xff]
        %v475 = vld [vmem:[#allocation5 + $0x28] sm:$0xff]
        %v476 = vld [vmem:[#allocation5 + $0x30] sm:$0xff]
        %v477 = vld [vmem:[#allocation5 + $0x38] sm:$0xff]
        %v478 = vld [vmem:[#allocation5 + $0x40] sm:$0xff]
        %v479 = vld [vmem:[#allocation5 + $0x48] sm:$0xff]
        %v480 = vld [vmem:[#allocation5 + $0x50] sm:$0xff]
        %v481 = vld [vmem:[#allocation5 + $0x58] sm:$0xff]
        %v482 = vld [vmem:[#allocation5 + $0x60] sm:$0xff]
        %v483 = vld [vmem:[#allocation5 + $0x68] sm:$0xff]
        %v484 = vld [vmem:[#allocation5 + $0x70] sm:$0xff]
        %v485 = vld [vmem:[#allocation5 + $0x78] sm:$0xff]
        %v486 = vld [vmem:[#allocation5 + $0x80] sm:$0xff]
        %v487 = vld [vmem:[#allocation5 + $0x88] sm:$0xff]
        %v488 = vld [vmem:[#allocation5 + $0x90] sm:$0xff]
        %v489 = vld [vmem:[#allocation5 + $0x98] sm:$0xff]
        %v490 = vld [vmem:[#allocation5 + $0xa0] sm:$0xff]
        %v491 = vld [vmem:[#allocation5 + $0xa8] sm:$0xff]
        %v492 = vld [vmem:[#allocation5 + $0xb0] sm:$0xff]
        %v493 = vld [vmem:[#allocation5 + $0xb8] sm:$0xff]
        %v494 = vld [vmem:[#allocation5 + $0xc0] sm:$0xff]
        %v495 = vld [vmem:[#allocation5 + $0xc8] sm:$0xff]
        %v496 = vld [vmem:[#allocation5 + $0xd0] sm:$0xff]
        %v497 = vld [vmem:[#allocation5 + $0xd8] sm:$0xff]
        %v498 = vld [vmem:[#allocation5 + $0xe0] sm:$0xff]
        %v499 = vld [vmem:[#allocation5 + $0xe8] sm:$0xff]
        %v500 = vld [vmem:[#allocation5 + $0xf0] sm:$0xff]
        %v501 = vld [vmem:[#allocation5 + $0xf8] sm:$0xff]
        %v502 = vld [vmem:[#allocation5 + $0x100] sm:$0xff]
        %v503 = vld [vmem:[#allocation5 + $0x108] sm:$0xff]
        %v504 = vld [vmem:[#allocation5 + $0x110] sm:$0xff]
        %v505 = vld [vmem:[#allocation5 + $0x118] sm:$0xff]
        %v506 = vld [vmem:[#allocation5 + $0x120] sm:$0xff]
        %v507 = vld [vmem:[#allocation5 + $0x128] sm:$0xff]
        %v508 = vld [vmem:[#allocation5 + $0x130] sm:$0xff]
        %v509 = vld [vmem:[#allocation5 + $0x138] sm:$0xff]
        %v510 = vld [vmem:[#allocation5 + $0x140] sm:$0xff]
        %v511 = vld [vmem:[#allocation5 + $0x148] sm:$0xff]
        %v512 = vld [vmem:[#allocation5 + $0x150] sm:$0xff]
        %v513 = vld [vmem:[#allocation5 + $0x158] sm:$0xff]
        %v514 = vld [vmem:[#allocation5 + $0x160] sm:$0xff]
        %v515 = vld [vmem:[#allocation5 + $0x168] sm:$0xff]
        %v516 = vld [vmem:[#allocation5 + $0x170] sm:$0xff]
        %v517 = vld [vmem:[#allocation5 + $0x178] sm:$0xff]
        %v518 = vld [vmem:[#allocation5 + $0x180] sm:$0xff]
        %v519 = vld [vmem:[#allocation5 + $0x188] sm:$0xff]
        %v520 = vld [vmem:[#allocation5 + $0x190] sm:$0xff]
        %v521 = vld [vmem:[#allocation5 + $0x198] sm:$0xff]
        %v522 = vld [vmem:[#allocation5 + $0x1a0] sm:$0xff]
        %v523 = vld [vmem:[#allocation5 + $0x1a8] sm:$0xff]
        %v524 = vld [vmem:[#allocation5 + $0x1b0] sm:$0xff]
        %v525 = vld [vmem:[#allocation5 + $0x1b8] sm:$0xff]
        %v526 = vld [vmem:[#allocation5 + $0x1c0] sm:$0xff]
        %v527 = vld [vmem:[#allocation5 + $0x1c8] sm:$0xff]
        %v528 = vld [vmem:[#allocation5 + $0x1d0] sm:$0xff]
        %v529 = vld [vmem:[#allocation5 + $0x1d8] sm:$0xff]
        %v530 = vld [vmem:[#allocation5 + $0x1e0] sm:$0xff]
        %v531 = vld [vmem:[#allocation5 + $0x1e8] sm:$0xff]
        %v532 = vld [vmem:[#allocation5 + $0x1f0] sm:$0xff]
        %v533 = vld [vmem:[#allocation5 + $0x1f8] sm:$0xff]
        %v534 = vld [vmem:[#allocation5 + $0x200] sm:$0xff]
        %v535 = vld [vmem:[#allocation5 + $0x208] sm:$0xff]
        %v536 = vld [vmem:[#allocation5 + $0x210] sm:$0xff]
        %v537 = vld [vmem:[#allocation5 + $0x218] sm:$0xff]
        %v538 = vld [vmem:[#allocation5 + $0x220] sm:$0xff]
        %v539 = vld [vmem:[#allocation5 + $0x228] sm:$0xff]
        %v540 = vld [vmem:[#allocation5 + $0x230] sm:$0xff]
        %v541 = vld [vmem:[#allocation5 + $0x238] sm:$0xff]
        %v542 = vld [vmem:[#allocation5 + $0x240] sm:$0xff]
        %v543 = vld [vmem:[#allocation5 + $0x248] sm:$0xff]
        %v544 = vld [vmem:[#allocation5 + $0x250] sm:$0xff]
        %v545 = vld [vmem:[#allocation5 + $0x258] sm:$0xff]
        %v546 = vld [vmem:[#allocation5 + $0x260] sm:$0xff]
        %v547 = vld [vmem:[#allocation5 + $0x268] sm:$0xff]
        %v548 = vld [vmem:[#allocation5 + $0x270] sm:$0xff]
        %v549 = vld [vmem:[#allocation5 + $0x278] sm:$0xff]
        %v550 = vld [vmem:[#allocation5 + $0x280] sm:$0xff]
        %v551 = vld [vmem:[#allocation5 + $0x288] sm:$0xff]
        %v552 = vld [vmem:[#allocation5 + $0x290] sm:$0xff]
        %v553 = vld [vmem:[#allocation5 + $0x298] sm:$0xff]
        %v554 = vld [vmem:[#allocation5 + $0x2a0] sm:$0xff]
        %v555 = vld [vmem:[#allocation5 + $0x2a8] sm:$0xff]
        %v556 = vld [vmem:[#allocation5 + $0x2b0] sm:$0xff]
        %v557 = vld [vmem:[#allocation5 + $0x2b8] sm:$0xff]
        %v558 = vld [vmem:[#allocation5 + $0x2c0] sm:$0xff]
        %v559 = vld [vmem:[#allocation5 + $0x2c8] sm:$0xff]
        %v560 = vld [vmem:[#allocation5 + $0x2d0] sm:$0xff]
        %v561 = vld [vmem:[#allocation5 + $0x2d8] sm:$0xff]
        %v562 = vld [vmem:[#allocation5 + $0x2e0] sm:$0xff]
        %v563 = vld [vmem:[#allocation5 + $0x2e8] sm:$0xff]
        %v564 = vld [vmem:[#allocation5 + $0x2f0] sm:$0xff]
        %v565 = vld [vmem:[#allocation5 + $0x2f8] sm:$0xff]
        %v566 = vld [vmem:[#allocation5 + $0x300] sm:$0xff]
        %v567 = vld [vmem:[#allocation5 + $0x308] sm:$0xff]
        %v568 = vld [vmem:[#allocation5 + $0x310] sm:$0xff]
        %v569 = vld [vmem:[#allocation5 + $0x318] sm:$0xff]
        %v570 = vld [vmem:[#allocation5 + $0x320] sm:$0xff]
        %v571 = vld [vmem:[#allocation5 + $0x328] sm:$0xff]
        %v572 = vld [vmem:[#allocation5 + $0x330] sm:$0xff]
        %v573 = vld [vmem:[#allocation5 + $0x338] sm:$0xff]
        %v574 = vld [vmem:[#allocation5 + $0x340] sm:$0xff]
        %v575 = vld [vmem:[#allocation5 + $0x348] sm:$0xff]
        %v576 = vld [vmem:[#allocation5 + $0x350] sm:$0xff]
        %v577 = vld [vmem:[#allocation5 + $0x358] sm:$0xff]
        %v578 = vld [vmem:[#allocation5 + $0x360] sm:$0xff]
        %v579 = vld [vmem:[#allocation5 + $0x368] sm:$0xff]
        %v580 = vld [vmem:[#allocation5 + $0x370] sm:$0xff]
        %v581 = vld [vmem:[#allocation5 + $0x378] sm:$0xff]
        %v582 = vld [vmem:[#allocation5 + $0x380] sm:$0xff]
        %v583 = vld [vmem:[#allocation5 + $0x388] sm:$0xff]
        %v584 = vld [vmem:[#allocation5 + $0x390] sm:$0xff]
        %v585 = vld [vmem:[#allocation5 + $0x398] sm:$0xff]
        %v586 = vld [vmem:[#allocation5 + $0x3a0] sm:$0xff]
        %v587 = vld [vmem:[#allocation5 + $0x3a8] sm:$0xff]
        %v588 = vld [vmem:[#allocation5 + $0x3b0] sm:$0xff]
        %v589 = vld [vmem:[#allocation5 + $0x3b8] sm:$0xff]
        %v590 = vld [vmem:[#allocation5 + $0x3c0] sm:$0xff]
        %v591 = vld [vmem:[#allocation5 + $0x3c8] sm:$0xff]
        %v592 = vld [vmem:[#allocation5 + $0x3d0] sm:$0xff]
        %v593 = vld [vmem:[#allocation5 + $0x3d8] sm:$0xff]
        %v594 = vld [vmem:[#allocation5 + $0x3e0] sm:$0xff]
        %v595 = vld [vmem:[#allocation5 + $0x3e8] sm:$0xff]
        %v596 = vld [vmem:[#allocation5 + $0x3f0] sm:$0xff]
        %v597 = vld [vmem:[#allocation5 + $0x3f8] sm:$0xff]
        %v598 = vld [vmem:[#allocation5 + $0x400] sm:$0xff]
        %v599 = vld [vmem:[#allocation5 + $0x408] sm:$0xff]
        %v600 = vld [vmem:[#allocation5 + $0x410] sm:$0xff]
        %v601 = vld [vmem:[#allocation5 + $0x418] sm:$0xff]
        %v602 = vld [vmem:[#allocation5 + $0x420] sm:$0xff]
        %v603 = vld [vmem:[#allocation5 + $0x428] sm:$0xff]
        %v604 = vld [vmem:[#allocation5 + $0x430] sm:$0xff]
        %v605 = vld [vmem:[#allocation5 + $0x438] sm:$0xff]
        %v606 = vld [vmem:[#allocation5 + $0x440] sm:$0xff]
        %v607 = vld [vmem:[#allocation5 + $0x448] sm:$0xff]
        %v608 = vld [vmem:[#allocation5 + $0x450] sm:$0xff]
        %v609 = vld [vmem:[#allocation5 + $0x458] sm:$0xff]
        %v610 = vld [vmem:[#allocation5 + $0x460] sm:$0xff]
        %v611 = vld [vmem:[#allocation5 + $0x468] sm:$0xff]
        %v612 = vld [vmem:[#allocation5 + $0x470] sm:$0xff]
        %v613 = vld [vmem:[#allocation5 + $0x478] sm:$0xff]
        %v614 = vld [vmem:[#allocation5 + $0x480] sm:$0xff]
        %v615 = vld [vmem:[#allocation5 + $0x488] sm:$0xff]
        %v616 = vld [vmem:[#allocation5 + $0x490] sm:$0xff]
        %v617 = vld [vmem:[#allocation5 + $0x498] sm:$0xff]
        %v618 = vld [vmem:[#allocation5 + $0x4a0] sm:$0xff]
        %v619 = vld [vmem:[#allocation5 + $0x4a8] sm:$0xff]
        %v620 = vld [vmem:[#allocation5 + $0x4b0] sm:$0xff]
        %v621 = vld [vmem:[#allocation5 + $0x4b8] sm:$0xff]
        %v622 = vld [vmem:[#allocation5 + $0x4c0] sm:$0xff]
        %v623 = vld [vmem:[#allocation5 + $0x4c8] sm:$0xff]
        %v624 = vld [vmem:[#allocation5 + $0x4d0] sm:$0xff]
        %v625 = vld [vmem:[#allocation5 + $0x4d8] sm:$0xff]
        %v626 = vld [vmem:[#allocation5 + $0x4e0] sm:$0xff]
        %v627 = vld [vmem:[#allocation5 + $0x4e8] sm:$0xff]
        %v628 = vld [vmem:[#allocation5 + $0x4f0] sm:$0xff]
        %v629 = vld [vmem:[#allocation5 + $0x4f8] sm:$0xff]
        %v630 = vld [vmem:[#allocation5 + $0x500] sm:$0xff]
        %v631 = vld [vmem:[#allocation5 + $0x508] sm:$0xff]
        %v632 = vld [vmem:[#allocation5 + $0x510] sm:$0xff]
        %v633 = vld [vmem:[#allocation5 + $0x518] sm:$0xff]
        %v634 = vld [vmem:[#allocation5 + $0x520] sm:$0xff]
        %v635 = vld [vmem:[#allocation5 + $0x528] sm:$0xff]
        %v636 = vld [vmem:[#allocation5 + $0x530] sm:$0xff]
        %v637 = vld [vmem:[#allocation5 + $0x538] sm:$0xff]
        %v638 = vld [vmem:[#allocation5 + $0x540] sm:$0xff]
        %v639 = vld [vmem:[#allocation5 + $0x548] sm:$0xff]
        %v640 = vld [vmem:[#allocation5 + $0x550] sm:$0xff]
        %v641 = vld [vmem:[#allocation5 + $0x558] sm:$0xff]
        %v642 = vld [vmem:[#allocation5 + $0x560] sm:$0xff]
        %v643 = vld [vmem:[#allocation5 + $0x568] sm:$0xff]
        %v644 = vld [vmem:[#allocation5 + $0x570] sm:$0xff]
        %v645 = vld [vmem:[#allocation5 + $0x578] sm:$0xff]
        %v646 = vld [vmem:[#allocation5 + $0x580] sm:$0xff]
        %v647 = vld [vmem:[#allocation5 + $0x588] sm:$0xff]
        %v648 = vld [vmem:[#allocation5 + $0x590] sm:$0xff]
        %v649 = vld [vmem:[#allocation5 + $0x598] sm:$0xff]
        %v650 = vld [vmem:[#allocation5 + $0x5a0] sm:$0xff]
        %v651 = vld [vmem:[#allocation5 + $0x5a8] sm:$0xff]
        %v652 = vld [vmem:[#allocation5 + $0x5b0] sm:$0xff]
        %v653 = vld [vmem:[#allocation5 + $0x5b8] sm:$0xff]
        %v654 = vld [vmem:[#allocation5 + $0x5c0] sm:$0xff]
        %v655 = vld [vmem:[#allocation5 + $0x5c8] sm:$0xff]
        %v656 = vld [vmem:[#allocation5 + $0x5d0] sm:$0xff]
        %v657 = vld [vmem:[#allocation5 + $0x5d8] sm:$0xff]
        %v658 = vld [vmem:[#allocation5 + $0x5e0] sm:$0xff]
        %v659 = vld [vmem:[#allocation5 + $0x5e8] sm:$0xff]
        %v660 = vld [vmem:[#allocation5 + $0x5f0] sm:$0xff]
        %v661 = vld [vmem:[#allocation5 + $0x5f8] sm:$0xff]
        %v662 = vld [vmem:[#allocation5 + $0x600] sm:$0xff]
        %v663 = vld [vmem:[#allocation5 + $0x608] sm:$0xff]
        %v664 = vld [vmem:[#allocation5 + $0x610] sm:$0xff]
        %v665 = vld [vmem:[#allocation5 + $0x618] sm:$0xff]
        %v666 = vld [vmem:[#allocation5 + $0x620] sm:$0xff]
        %v667 = vld [vmem:[#allocation5 + $0x628] sm:$0xff]
        %v668 = vld [vmem:[#allocation5 + $0x630] sm:$0xff]
        %v669 = vld [vmem:[#allocation5 + $0x638] sm:$0xff]
        %v670 = vld [vmem:[#allocation5 + $0x640] sm:$0xff]
        %v671 = vld [vmem:[#allocation5 + $0x648] sm:$0xff]
        %v672 = vld [vmem:[#allocation5 + $0x650] sm:$0xff]
        %v673 = vld [vmem:[#allocation5 + $0x658] sm:$0xff]
        %v674 = vld [vmem:[#allocation5 + $0x660] sm:$0xff]
        %v675 = vld [vmem:[#allocation5 + $0x668] sm:$0xff]
        %v676 = vld [vmem:[#allocation5 + $0x670] sm:$0xff]
        %v677 = vld [vmem:[#allocation5 + $0x678] sm:$0xff]
        %v678 = vld [vmem:[#allocation5 + $0x680] sm:$0xff]
        %v679 = vld [vmem:[#allocation5 + $0x688] sm:$0xff]
        %v680 = vld [vmem:[#allocation5 + $0x690] sm:$0xff]
        %v681 = vld [vmem:[#allocation5 + $0x698] sm:$0xff]
        %v682 = vld [vmem:[#allocation5 + $0x6a0] sm:$0xff]
        %v683 = vld [vmem:[#allocation5 + $0x6a8] sm:$0xff]
        %v684 = vld [vmem:[#allocation5 + $0x6b0] sm:$0xff]
        %v685 = vld [vmem:[#allocation5 + $0x6b8] sm:$0xff]
        %v686 = vld [vmem:[#allocation5 + $0x6c0] sm:$0xff]
        %v687 = vld [vmem:[#allocation5 + $0x6c8] sm:$0xff]
        %v688 = vld [vmem:[#allocation5 + $0x6d0] sm:$0xff]
        %v689 = vld [vmem:[#allocation5 + $0x6d8] sm:$0xff]
        %v690 = vld [vmem:[#allocation5 + $0x6e0] sm:$0xff]
        %v691 = vld [vmem:[#allocation5 + $0x6e8] sm:$0xff]
        %v692 = vld [vmem:[#allocation5 + $0x6f0] sm:$0xff]
        %v693 = vld [vmem:[#allocation5 + $0x6f8] sm:$0xff]
        %v694 = vld [vmem:[#allocation5 + $0x700] sm:$0xff]
        %v695 = vld [vmem:[#allocation5 + $0x708] sm:$0xff]
        %v696 = vld [vmem:[#allocation5 + $0x710] sm:$0xff]
        %v697 = vld [vmem:[#allocation5 + $0x718] sm:$0xff]
        %v698 = vld [vmem:[#allocation5 + $0x720] sm:$0xff]
        %v699 = vld [vmem:[#allocation5 + $0x728] sm:$0xff]
        %v700 = vld [vmem:[#allocation5 + $0x730] sm:$0xff]
        %v701 = vld [vmem:[#allocation5 + $0x738] sm:$0xff]
        %v702 = vld [vmem:[#allocation5 + $0x740] sm:$0xff]
        %v703 = vld [vmem:[#allocation5 + $0x748] sm:$0xff]
        %v704 = vld [vmem:[#allocation5 + $0x750] sm:$0xff]
        %v705 = vld [vmem:[#allocation5 + $0x758] sm:$0xff]
        %v706 = vld [vmem:[#allocation5 + $0x760] sm:$0xff]
        %v707 = vld [vmem:[#allocation5 + $0x768] sm:$0xff]
        %v708 = vld [vmem:[#allocation5 + $0x770] sm:$0xff]
        %v709 = vld [vmem:[#allocation5 + $0x778] sm:$0xff]
        %v710 = vld [vmem:[#allocation5 + $0x780] sm:$0xff]
        %v711 = vld [vmem:[#allocation5 + $0x788] sm:$0xff]
        %v712 = vld [vmem:[#allocation5 + $0x790] sm:$0xff]
        %v713 = vld [vmem:[#allocation5 + $0x798] sm:$0xff]
        %v714 = vld [vmem:[#allocation5 + $0x7a0] sm:$0xff]
        %v715 = vld [vmem:[#allocation5 + $0x7a8] sm:$0xff]
        %v716 = vld [vmem:[#allocation5 + $0x7b0] sm:$0xff]
        %v717 = vld [vmem:[#allocation5 + $0x7b8] sm:$0xff]
        %v718 = vld [vmem:[#allocation5 + $0x7c0] sm:$0xff]
        %v719 = vld [vmem:[#allocation5 + $0x7c8] sm:$0xff]
        %v720 = vld [vmem:[#allocation5 + $0x7d0] sm:$0xff]
        %v721 = vld [vmem:[#allocation5 + $0x7d8] sm:$0xff]
        %v722 = vld [vmem:[#allocation5 + $0x7e0] sm:$0xff]
        %v723 = vld [vmem:[#allocation5 + $0x7e8] sm:$0xff]
        %v724 = vld [vmem:[#allocation5 + $0x7f0] sm:$0xff]
        %v725 = vld [vmem:[#allocation5 + $0x7f8] sm:$0xff]
        %v726 = vld [vmem:[#allocation5 + $0x800] sm:$0xff]
        %v727 = vld [vmem:[#allocation5 + $0x808] sm:$0xff]
        %v728 = vld [vmem:[#allocation5 + $0x810] sm:$0xff]
        %v729 = vld [vmem:[#allocation5 + $0x818] sm:$0xff]
        %v730 = vld [vmem:[#allocation5 + $0x820] sm:$0xff]
        %v731 = vld [vmem:[#allocation5 + $0x828] sm:$0xff]
        %v732 = vld [vmem:[#allocation5 + $0x830] sm:$0xff]
        %v733 = vld [vmem:[#allocation5 + $0x838] sm:$0xff]
        %v734 = vld [vmem:[#allocation5 + $0x840] sm:$0xff]
        %v735 = vld [vmem:[#allocation5 + $0x848] sm:$0xff]
        %v736 = vld [vmem:[#allocation5 + $0x850] sm:$0xff]
        %v737 = vld [vmem:[#allocation5 + $0x858] sm:$0xff]
        %v738 = vld [vmem:[#allocation5 + $0x860] sm:$0xff]
        %v739 = vld [vmem:[#allocation5 + $0x868] sm:$0xff]
        %v740 = vld [vmem:[#allocation5 + $0x870] sm:$0xff]
        %v741 = vld [vmem:[#allocation5 + $0x878] sm:$0xff]
        %v742 = vld [vmem:[#allocation5 + $0x880] sm:$0xff]
        %v743 = vld [vmem:[#allocation5 + $0x888] sm:$0xff]
        %v744 = vld [vmem:[#allocation5 + $0x890] sm:$0xff]
        %v745 = vld [vmem:[#allocation5 + $0x898] sm:$0xff]
        %v746 = vld [vmem:[#allocation5 + $0x8a0] sm:$0xff]
        %v747 = vld [vmem:[#allocation5 + $0x8a8] sm:$0xff]
        %v748 = vld [vmem:[#allocation5 + $0x8b0] sm:$0xff]
        %v749 = vld [vmem:[#allocation5 + $0x8b8] sm:$0xff]
        %v750 = vld [vmem:[#allocation5 + $0x8c0] sm:$0xff]
        %v751 = vld [vmem:[#allocation5 + $0x8c8] sm:$0xff]
        %v752 = vld [vmem:[#allocation5 + $0x8d0] sm:$0xff]
        %v753 = vld [vmem:[#allocation5 + $0x8d8] sm:$0xff]
        %v754 = vld [vmem:[#allocation5 + $0x8e0] sm:$0xff]
        %v755 = vld [vmem:[#allocation5 + $0x8e8] sm:$0xff]
        %v756 = vld [vmem:[#allocation5 + $0x8f0] sm:$0xff]
        %v757 = vld [vmem:[#allocation5 + $0x8f8] sm:$0xff]
        %v758 = vld [vmem:[#allocation5 + $0x900] sm:$0xff]
        %v759 = vld [vmem:[#allocation5 + $0x908] sm:$0xff]
        %v760 = vld [vmem:[#allocation5 + $0x910] sm:$0xff]
        %v761 = vld [vmem:[#allocation5 + $0x918] sm:$0xff]
        %v762 = vld [vmem:[#allocation5 + $0x920] sm:$0xff]
        %v763 = vld [vmem:[#allocation5 + $0x928] sm:$0xff]
        %v764 = vld [vmem:[#allocation5 + $0x930] sm:$0xff]
        %v765 = vld [vmem:[#allocation5 + $0x938] sm:$0xff]
        %v766 = vld [vmem:[#allocation5 + $0x940] sm:$0xff]
        %v767 = vld [vmem:[#allocation5 + $0x948] sm:$0xff]
        %v768 = vld [vmem:[#allocation5 + $0x950] sm:$0xff]
        %v769 = vld [vmem:[#allocation5 + $0x958] sm:$0xff]
        %v770 = vld [vmem:[#allocation5 + $0x960] sm:$0xff]
        %v771 = vld [vmem:[#allocation5 + $0x968] sm:$0xff]
        %v772 = vld [vmem:[#allocation5 + $0x970] sm:$0xff]
        %v773 = vld [vmem:[#allocation5 + $0x978] sm:$0xff]
        %v774 = vld [vmem:[#allocation5 + $0x980] sm:$0xff]
        %v775 = vld [vmem:[#allocation5 + $0x988] sm:$0xff]
        %v776 = vld [vmem:[#allocation5 + $0x990] sm:$0xff]
        %v777 = vld [vmem:[#allocation5 + $0x998] sm:$0xff]
        %v778 = vld [vmem:[#allocation5 + $0x9a0] sm:$0xff]
        %v779 = vld [vmem:[#allocation5 + $0x9a8] sm:$0xff]
        %v780 = vld [vmem:[#allocation5 + $0x9b0] sm:$0xff]
        %v781 = vld [vmem:[#allocation5 + $0x9b8] sm:$0xff]
        %v782 = vld [vmem:[#allocation5 + $0x9c0] sm:$0xff]
        %v783 = vld [vmem:[#allocation5 + $0x9c8] sm:$0xff]
        %v784 = vld [vmem:[#allocation5 + $0x9d0] sm:$0xff]
        %v785 = vld [vmem:[#allocation5 + $0x9d8] sm:$0xff]
        %v786 = vld [vmem:[#allocation5 + $0x9e0] sm:$0xff]
        %v787 = vld [vmem:[#allocation5 + $0x9e8] sm:$0xff]
        %v788 = vld [vmem:[#allocation5 + $0x9f0] sm:$0xff]
        %v789 = vld [vmem:[#allocation5 + $0x9f8] sm:$0xff]
        %v790 = vld [vmem:[#allocation5 + $0xa00] sm:$0xff]
        %v791 = vld [vmem:[#allocation5 + $0xa08] sm:$0xff]
        %v792 = vld [vmem:[#allocation5 + $0xa10] sm:$0xff]
        %v793 = vld [vmem:[#allocation5 + $0xa18] sm:$0xff]
        %v794 = vld [vmem:[#allocation5 + $0xa20] sm:$0xff]
        %v795 = vld [vmem:[#allocation5 + $0xa28] sm:$0xff]
        %v796 = vld [vmem:[#allocation5 + $0xa30] sm:$0xff]
        %v797 = vld [vmem:[#allocation5 + $0xa38] sm:$0xff]
        %v798 = vld [vmem:[#allocation5 + $0xa40] sm:$0xff]
        %v799 = vld [vmem:[#allocation5 + $0xa48] sm:$0xff]
        %v800 = vld [vmem:[#allocation5 + $0xa50] sm:$0x7f]
        %v801 = vld [vmem:[#allocation5 + $0xa58] sm:$0x7f]
        %v802 = vld [vmem:[#allocation5 + $0xa60] sm:$0x7f]
        %v803 = vld [vmem:[#allocation5 + $0xa68] sm:$0x7f]
        %v804 = vld [vmem:[#allocation5 + $0xa70] sm:$0x7f]
        %v805 = vld [vmem:[#allocation5 + $0xa78] sm:$0x7f]
        %vm806 = vcmask 515072
        %v808 = vsel %vm806, %v469, 0
        %vm810 = vcmask 1046528
        %v812 = vsel %vm810, %v800, 0
        %v815 = vsel %vm810, %v801, 0
        %v818 = vsel %vm810, %v802, 0
        %v821 = vsel %vm810, %v803, 0
        %v824 = vsel %vm810, %v804, 0
        %v827 = vsel %vm810, %v805, 0
        %829 = vmatprep.subr.mxu0 %v471
        %830 = vmatpush1.msra.mxu0 %v470
        %831 = vmatprep.subr.mxu0 %v477
        %832 = vmatpush1.msra.mxu0 %v476
        %833 = vmatprep.subr.mxu0 %v483
        %834 = vmatpush1.msra.mxu0 %v482
        %835 = vmatprep.subr.mxu0 %v489
        %836 = vmatpush1.msra.mxu0 %v488
        %837 = vmatprep.subr.mxu0 %v495
        %838 = vmatpush1.msra.mxu0 %v494
        %839 = vmatprep.subr.mxu0 %v501
        %840 = vmatpush1.msra.mxu0 %v500
        %841 = vmatprep.subr.mxu0 %v507
        %842 = vmatpush1.msra.mxu0 %v506
        %843 = vmatprep.subr.mxu0 %v513
        %844 = vmatpush1.msra.mxu0 %v512
        %845 = vmatprep.subr.mxu0 %v519
        %846 = vmatpush1.msra.mxu0 %v518
        %847 = vmatprep.subr.mxu0 %v525
        %848 = vmatpush1.msra.mxu0 %v524
        %849 = vmatprep.subr.mxu0 %v531
        %850 = vmatpush1.msra.mxu0 %v530
        %851 = vmatprep.subr.mxu0 %v537
        %852 = vmatpush1.msra.mxu0 %v536
        %853 = vmatprep.subr.mxu0 %v543
        %854 = vmatpush1.msra.mxu0 %v542
        %855 = vmatprep.subr.mxu0 %v549
        %856 = vmatpush1.msra.mxu0 %v548
        %857 = vmatprep.subr.mxu0 %v555
        %858 = vmatpush1.msra.mxu0 %v554
        %859 = vmatprep.subr.mxu0 %v561
        %860 = vmatpush1.msra.mxu0 %v560
        %861 = vmatprep.subr.mxu0 %v567
        %862 = vmatpush1.msra.mxu0 %v566
        %863 = vmatprep.subr.mxu0 %v573
        %864 = vmatpush1.msra.mxu0 %v572
        %865 = vmatprep.subr.mxu0 %v579
        %866 = vmatpush1.msra.mxu0 %v578
        %867 = vmatprep.subr.mxu0 %v585
        %868 = vmatpush1.msra.mxu0 %v584
        %869 = vmatprep.subr.mxu0 %v591
        %870 = vmatpush1.msra.mxu0 %v590
        %871 = vmatprep.subr.mxu0 %v597
        %872 = vmatpush1.msra.mxu0 %v596
        %873 = vmatprep.subr.mxu0 %v603
        %874 = vmatpush1.msra.mxu0 %v602
        %875 = vmatprep.subr.mxu0 %v609
        %876 = vmatpush1.msra.mxu0 %v608
        %877 = vmatprep.subr.mxu0 %v615
        %878 = vmatpush1.msra.mxu0 %v614
        %879 = vmatprep.subr.mxu0 %v621
        %880 = vmatpush1.msra.mxu0 %v620
        %881 = vmatprep.subr.mxu0 %v627
        %882 = vmatpush1.msra.mxu0 %v626
        %883 = vmatprep.subr.mxu0 %v633
        %884 = vmatpush1.msra.mxu0 %v632
        %885 = vmatprep.subr.mxu0 %v639
        %886 = vmatpush1.msra.mxu0 %v638
        %887 = vmatprep.subr.mxu0 %v645
        %888 = vmatpush1.msra.mxu0 %v644
        %889 = vmatprep.subr.mxu0 %v651
        %890 = vmatpush1.msra.mxu0 %v650
        %891 = vmatprep.subr.mxu0 %v657
        %892 = vmatpush1.msra.mxu0 %v656
        %893 = vmatprep.mubr.f32.mxu0 %v467
        %894 = vmatmul.mubr.f32.gmra.mrb[0].mxu0 %v466
        %v895 = vpop.f32.mrb[0].mxu0
        %v896 = vadd.f32 0.0, %v895
        %v897 = vpop.f32.mrb[0].mxu0
        %v898 = vadd.f32 0.0, %v897
        %899 = vdwg.mxu0
        %900 = vmatprep.subr.mxu0 %v663
        %901 = vmatpush1.msra.mxu0 %v662
        %902 = vmatprep.subr.mxu0 %v669
        %903 = vmatpush1.msra.mxu0 %v668
        %904 = vmatprep.subr.mxu0 %v675
        %905 = vmatpush1.msra.mxu0 %v674
        %906 = vmatprep.subr.mxu0 %v681
        %907 = vmatpush1.msra.mxu0 %v680
        %908 = vmatprep.subr.mxu0 %v687
        %909 = vmatpush1.msra.mxu0 %v686
        %910 = vmatprep.subr.mxu0 %v693
        %911 = vmatpush1.msra.mxu0 %v692
        %912 = vmatprep.subr.mxu0 %v699
        %913 = vmatpush1.msra.mxu0 %v698
        %914 = vmatprep.subr.mxu0 %v705
        %915 = vmatpush1.msra.mxu0 %v704
        %916 = vmatprep.subr.mxu0 %v711
        %917 = vmatpush1.msra.mxu0 %v710
        %918 = vmatprep.subr.mxu0 %v717
        %919 = vmatpush1.msra.mxu0 %v716
        %920 = vmatprep.subr.mxu0 %v723
        %921 = vmatpush1.msra.mxu0 %v722
        %922 = vmatprep.subr.mxu0 %v729
        %923 = vmatpush1.msra.mxu0 %v728
        %924 = vmatprep.subr.mxu0 %v735
        %925 = vmatpush1.msra.mxu0 %v734
        %926 = vmatprep.subr.mxu0 %v741
        %927 = vmatpush1.msra.mxu0 %v740
        %928 = vmatprep.subr.mxu0 %v747
        %929 = vmatpush1.msra.mxu0 %v746
        %930 = vmatprep.subr.mxu0 %v753
        %931 = vmatpush1.msra.mxu0 %v752
        %932 = vmatprep.subr.mxu0 %v759
        %933 = vmatpush1.msra.mxu0 %v758
        %934 = vmatprep.subr.mxu0 %v765
        %935 = vmatpush1.msra.mxu0 %v764
        %936 = vmatprep.subr.mxu0 %v771
        %937 = vmatpush1.msra.mxu0 %v770
        %938 = vmatprep.subr.mxu0 %v777
        %939 = vmatpush1.msra.mxu0 %v776
        %940 = vmatprep.subr.mxu0 %v783
        %941 = vmatpush1.msra.mxu0 %v782
        %942 = vmatprep.subr.mxu0 %v789
        %943 = vmatpush1.msra.mxu0 %v788
        %944 = vmatprep.subr.mxu0 %v795
        %945 = vmatpush1.msra.mxu0 %v794
        %946 = vmatprep.subr.mxu0 %v815
        %947 = vmatpush1.msra.mxu0 %v812
        %948 = vmatprep.subr.mxu0 0.0
        %949 = vmatpush1.msra.mxu0 0.0
        %950 = vmatprep.subr.mxu0 0.0
        %951 = vmatpush1.msra.mxu0 0.0
        %952 = vmatprep.subr.mxu0 0.0
        %953 = vmatpush1.msra.mxu0 0.0
        %954 = vmatprep.subr.mxu0 0.0
        %955 = vmatpush1.msra.mxu0 0.0
        %956 = vmatprep.subr.mxu0 0.0
        %957 = vmatpush1.msra.mxu0 0.0
        %958 = vmatprep.subr.mxu0 0.0
        %959 = vmatpush1.msra.mxu0 0.0
        %960 = vmatprep.subr.mxu0 0.0
        %961 = vmatpush1.msra.mxu0 0.0
        %962 = vmatprep.subr.mxu0 0.0
        %963 = vmatpush1.msra.mxu0 0.0
        %964 = vmatprep.mubr.f32.mxu0 %v808
        %965 = vmatmul.mubr.f32.gmra.mrb[0].mxu0 %v468
        %v966 = vpop.f32.mrb[0].mxu0
        %v967 = vadd.f32 %v896, %v966
        %v968 = vpop.f32.mrb[0].mxu0
        %v969 = vadd.f32 %v898, %v968
        %970 = vdwg.mxu0
        %971 = vmatprep.subr.mxu0 %v473
        %972 = vmatpush1.msra.mxu0 %v472
        %973 = vmatprep.subr.mxu0 %v479
        %974 = vmatpush1.msra.mxu0 %v478
        %975 = vmatprep.subr.mxu0 %v485
        %976 = vmatpush1.msra.mxu0 %v484
        %977 = vmatprep.subr.mxu0 %v491
        %978 = vmatpush1.msra.mxu0 %v490
        %979 = vmatprep.subr.mxu0 %v497
        %980 = vmatpush1.msra.mxu0 %v496
        %981 = vmatprep.subr.mxu0 %v503
        %982 = vmatpush1.msra.mxu0 %v502
        %983 = vmatprep.subr.mxu0 %v509
        %984 = vmatpush1.msra.mxu0 %v508
        %985 = vmatprep.subr.mxu0 %v515
        %986 = vmatpush1.msra.mxu0 %v514
        %987 = vmatprep.subr.mxu0 %v521
        %988 = vmatpush1.msra.mxu0 %v520
        %989 = vmatprep.subr.mxu0 %v527
        %990 = vmatpush1.msra.mxu0 %v526
        %991 = vmatprep.subr.mxu0 %v533
        %992 = vmatpush1.msra.mxu0 %v532
        %993 = vmatprep.subr.mxu0 %v539
        %994 = vmatpush1.msra.mxu0 %v538
        %995 = vmatprep.subr.mxu0 %v545
        %996 = vmatpush1.msra.mxu0 %v544
        %997 = vmatprep.subr.mxu0 %v551
        %998 = vmatpush1.msra.mxu0 %v550
        %999 = vmatprep.subr.mxu0 %v557
        %1000 = vmatpush1.msra.mxu0 %v556
        %1001 = vmatprep.subr.mxu0 %v563
        %1002 = vmatpush1.msra.mxu0 %v562
        %1003 = vmatprep.subr.mxu0 %v569
        %1004 = vmatpush1.msra.mxu0 %v568
        %1005 = vmatprep.subr.mxu0 %v575
        %1006 = vmatpush1.msra.mxu0 %v574
        %1007 = vmatprep.subr.mxu0 %v581
        %1008 = vmatpush1.msra.mxu0 %v580
        %1009 = vmatprep.subr.mxu0 %v587
        %1010 = vmatpush1.msra.mxu0 %v586
        %1011 = vmatprep.subr.mxu0 %v593
        %1012 = vmatpush1.msra.mxu0 %v592
        %1013 = vmatprep.subr.mxu0 %v599
        %1014 = vmatpush1.msra.mxu0 %v598
        %1015 = vmatprep.subr.mxu0 %v605
        %1016 = vmatpush1.msra.mxu0 %v604
        %1017 = vmatprep.subr.mxu0 %v611
        %1018 = vmatpush1.msra.mxu0 %v610
        %1019 = vmatprep.subr.mxu0 %v617
        %1020 = vmatpush1.msra.mxu0 %v616
        %1021 = vmatprep.subr.mxu0 %v623
        %1022 = vmatpush1.msra.mxu0 %v622
        %1023 = vmatprep.subr.mxu0 %v629
        %1024 = vmatpush1.msra.mxu0 %v628
        %1025 = vmatprep.subr.mxu0 %v635
        %1026 = vmatpush1.msra.mxu0 %v634
        %1027 = vmatprep.subr.mxu0 %v641
        %1028 = vmatpush1.msra.mxu0 %v640
        %1029 = vmatprep.subr.mxu0 %v647
        %1030 = vmatpush1.msra.mxu0 %v646
        %1031 = vmatprep.subr.mxu0 %v653
        %1032 = vmatpush1.msra.mxu0 %v652
        %1033 = vmatprep.subr.mxu0 %v659
        %1034 = vmatpush1.msra.mxu0 %v658
        %1035 = vmatprep.mubr.f32.mxu0 %v467
        %1036 = vmatmul.mubr.f32.gmra.mrb[0].mxu0 %v466
        %v1037 = vpop.f32.mrb[0].mxu0
        %v1038 = vadd.f32 0.0, %v1037
        %v1039 = vpop.f32.mrb[0].mxu0
        %v1040 = vadd.f32 0.0, %v1039
        %1041 = vdwg.mxu0
        %1042 = vmatprep.subr.mxu0 %v665
        %1043 = vmatpush1.msra.mxu0 %v664
        %1044 = vmatprep.subr.mxu0 %v671
        %1045 = vmatpush1.msra.mxu0 %v670
        %1046 = vmatprep.subr.mxu0 %v677
        %1047 = vmatpush1.msra.mxu0 %v676
        %1048 = vmatprep.subr.mxu0 %v683
        %1049 = vmatpush1.msra.mxu0 %v682
        %1050 = vmatprep.subr.mxu0 %v689
        %1051 = vmatpush1.msra.mxu0 %v688
        %1052 = vmatprep.subr.mxu0 %v695
        %1053 = vmatpush1.msra.mxu0 %v694
        %1054 = vmatprep.subr.mxu0 %v701
        %1055 = vmatpush1.msra.mxu0 %v700
        %1056 = vmatprep.subr.mxu0 %v707
        %1057 = vmatpush1.msra.mxu0 %v706
        %1058 = vmatprep.subr.mxu0 %v713
        %1059 = vmatpush1.msra.mxu0 %v712
        %1060 = vmatprep.subr.mxu0 %v719
        %1061 = vmatpush1.msra.mxu0 %v718
        %1062 = vmatprep.subr.mxu0 %v725
        %1063 = vmatpush1.msra.mxu0 %v724
        %1064 = vmatprep.subr.mxu0 %v731
        %1065 = vmatpush1.msra.mxu0 %v730
        %1066 = vmatprep.subr.mxu0 %v737
        %1067 = vmatpush1.msra.mxu0 %v736
        %1068 = vmatprep.subr.mxu0 %v743
        %1069 = vmatpush1.msra.mxu0 %v742
        %1070 = vmatprep.subr.mxu0 %v749
        %1071 = vmatpush1.msra.mxu0 %v748
        %1072 = vmatprep.subr.mxu0 %v755
        %1073 = vmatpush1.msra.mxu0 %v754
        %1074 = vmatprep.subr.mxu0 %v761
        %1075 = vmatpush1.msra.mxu0 %v760
        %1076 = vmatprep.subr.mxu0 %v767
        %1077 = vmatpush1.msra.mxu0 %v766
        %1078 = vmatprep.subr.mxu0 %v773
        %1079 = vmatpush1.msra.mxu0 %v772
        %1080 = vmatprep.subr.mxu0 %v779
        %1081 = vmatpush1.msra.mxu0 %v778
        %1082 = vmatprep.subr.mxu0 %v785
        %1083 = vmatpush1.msra.mxu0 %v784
        %1084 = vmatprep.subr.mxu0 %v791
        %1085 = vmatpush1.msra.mxu0 %v790
        %1086 = vmatprep.subr.mxu0 %v797
        %1087 = vmatpush1.msra.mxu0 %v796
        %1088 = vmatprep.subr.mxu0 %v821
        %1089 = vmatpush1.msra.mxu0 %v818
        %1090 = vmatprep.subr.mxu0 0.0
        %1091 = vmatpush1.msra.mxu0 0.0
        %1092 = vmatprep.subr.mxu0 0.0
        %1093 = vmatpush1.msra.mxu0 0.0
        %1094 = vmatprep.subr.mxu0 0.0
        %1095 = vmatpush1.msra.mxu0 0.0
        %1096 = vmatprep.subr.mxu0 0.0
        %1097 = vmatpush1.msra.mxu0 0.0
        %1098 = vmatprep.subr.mxu0 0.0
        %1099 = vmatpush1.msra.mxu0 0.0
        %1100 = vmatprep.subr.mxu0 0.0
        %1101 = vmatpush1.msra.mxu0 0.0
        %1102 = vmatprep.subr.mxu0 0.0
        %1103 = vmatpush1.msra.mxu0 0.0
        %1104 = vmatprep.subr.mxu0 0.0
        %1105 = vmatpush1.msra.mxu0 0.0
        %1106 = vmatprep.mubr.f32.mxu0 %v808
        %1107 = vmatmul.mubr.f32.gmra.mrb[0].mxu0 %v468
        %v1108 = vpop.f32.mrb[0].mxu0
        %v1109 = vadd.f32 %v1038, %v1108
        %v1110 = vpop.f32.mrb[0].mxu0
        %v1111 = vadd.f32 %v1040, %v1110
        %1112 = vdwg.mxu0
        %1113 = vmatprep.subr.mxu0 %v475
        %1114 = vmatpush1.msra.mxu0 %v474
        %1115 = vmatprep.subr.mxu0 %v481
        %1116 = vmatpush1.msra.mxu0 %v480
        %1117 = vmatprep.subr.mxu0 %v487
        %1118 = vmatpush1.msra.mxu0 %v486
        %1119 = vmatprep.subr.mxu0 %v493
        %1120 = vmatpush1.msra.mxu0 %v492
        %1121 = vmatprep.subr.mxu0 %v499
        %1122 = vmatpush1.msra.mxu0 %v498
        %1123 = vmatprep.subr.mxu0 %v505
        %1124 = vmatpush1.msra.mxu0 %v504
        %1125 = vmatprep.subr.mxu0 %v511
        %1126 = vmatpush1.msra.mxu0 %v510
        %1127 = vmatprep.subr.mxu0 %v517
        %1128 = vmatpush1.msra.mxu0 %v516
        %1129 = vmatprep.subr.mxu0 %v523
        %1130 = vmatpush1.msra.mxu0 %v522
        %1131 = vmatprep.subr.mxu0 %v529
        %1132 = vmatpush1.msra.mxu0 %v528
        %1133 = vmatprep.subr.mxu0 %v535
        %1134 = vmatpush1.msra.mxu0 %v534
        %1135 = vmatprep.subr.mxu0 %v541
        %1136 = vmatpush1.msra.mxu0 %v540
        %1137 = vmatprep.subr.mxu0 %v547
        %1138 = vmatpush1.msra.mxu0 %v546
        %1139 = vmatprep.subr.mxu0 %v553
        %1140 = vmatpush1.msra.mxu0 %v552
        %1141 = vmatprep.subr.mxu0 %v559
        %1142 = vmatpush1.msra.mxu0 %v558
        %1143 = vmatprep.subr.mxu0 %v565
        %1144 = vmatpush1.msra.mxu0 %v564
        %1145 = vmatprep.subr.mxu0 %v571
        %1146 = vmatpush1.msra.mxu0 %v570
        %1147 = vmatprep.subr.mxu0 %v577
        %1148 = vmatpush1.msra.mxu0 %v576
        %1149 = vmatprep.subr.mxu0 %v583
        %1150 = vmatpush1.msra.mxu0 %v582
        %1151 = vmatprep.subr.mxu0 %v589
        %1152 = vmatpush1.msra.mxu0 %v588
        %1153 = vmatprep.subr.mxu0 %v595
        %1154 = vmatpush1.msra.mxu0 %v594
        %1155 = vmatprep.subr.mxu0 %v601
        %1156 = vmatpush1.msra.mxu0 %v600
        %1157 = vmatprep.subr.mxu0 %v607
        %1158 = vmatpush1.msra.mxu0 %v606
        %1159 = vmatprep.subr.mxu0 %v613
        %1160 = vmatpush1.msra.mxu0 %v612
        %1161 = vmatprep.subr.mxu0 %v619
        %1162 = vmatpush1.msra.mxu0 %v618
        %1163 = vmatprep.subr.mxu0 %v625
        %1164 = vmatpush1.msra.mxu0 %v624
        %1165 = vmatprep.subr.mxu0 %v631
        %1166 = vmatpush1.msra.mxu0 %v630
        %1167 = vmatprep.subr.mxu0 %v637
        %1168 = vmatpush1.msra.mxu0 %v636
        %1169 = vmatprep.subr.mxu0 %v643
        %1170 = vmatpush1.msra.mxu0 %v642
        %1171 = vmatprep.subr.mxu0 %v649
        %1172 = vmatpush1.msra.mxu0 %v648
        %1173 = vmatprep.subr.mxu0 %v655
        %1174 = vmatpush1.msra.mxu0 %v654
        %1175 = vmatprep.subr.mxu0 %v661
        %1176 = vmatpush1.msra.mxu0 %v660
        %1177 = vmatprep.mubr.f32.mxu0 %v467
        %1178 = vmatmul.mubr.f32.gmra.mrb[0].mxu0 %v466
        %v1179 = vpop.f32.mrb[0].mxu0
        %v1180 = vadd.f32 0.0, %v1179
        %v1181 = vpop.f32.mrb[0].mxu0
        %v1182 = vadd.f32 0.0, %v1181
        %1183 = vdwg.mxu0
        %1184 = vmatprep.subr.mxu0 %v667
        %1185 = vmatpush1.msra.mxu0 %v666
        %1186 = vmatprep.subr.mxu0 %v673
        %1187 = vmatpush1.msra.mxu0 %v672
        %1188 = vmatprep.subr.mxu0 %v679
        %1189 = vmatpush1.msra.mxu0 %v678
        %1190 = vmatprep.subr.mxu0 %v685
        %1191 = vmatpush1.msra.mxu0 %v684
        %1192 = vmatprep.subr.mxu0 %v691
        %1193 = vmatpush1.msra.mxu0 %v690
        %1194 = vmatprep.subr.mxu0 %v697
        %1195 = vmatpush1.msra.mxu0 %v696
        %1196 = vmatprep.subr.mxu0 %v703
        %1197 = vmatpush1.msra.mxu0 %v702
        %1198 = vmatprep.subr.mxu0 %v709
        %1199 = vmatpush1.msra.mxu0 %v708
        %1200 = vmatprep.subr.mxu0 %v715
        %1201 = vmatpush1.msra.mxu0 %v714
        %1202 = vmatprep.subr.mxu0 %v721
        %1203 = vmatpush1.msra.mxu0 %v720
        %1204 = vmatprep.subr.mxu0 %v727
        %1205 = vmatpush1.msra.mxu0 %v726
        %1206 = vmatprep.subr.mxu0 %v733
        %1207 = vmatpush1.msra.mxu0 %v732
        %1208 = vmatprep.subr.mxu0 %v739
        %1209 = vmatpush1.msra.mxu0 %v738
        %1210 = vmatprep.subr.mxu0 %v745
        %1211 = vmatpush1.msra.mxu0 %v744
        %1212 = vmatprep.subr.mxu0 %v751
        %1213 = vmatpush1.msra.mxu0 %v750
        %1214 = vmatprep.subr.mxu0 %v757
        %1215 = vmatpush1.msra.mxu0 %v756
        %1216 = vmatprep.subr.mxu0 %v763
        %1217 = vmatpush1.msra.mxu0 %v762
        %1218 = vmatprep.subr.mxu0 %v769
        %1219 = vmatpush1.msra.mxu0 %v768
        %1220 = vmatprep.subr.mxu0 %v775
        %1221 = vmatpush1.msra.mxu0 %v774
        %1222 = vmatprep.subr.mxu0 %v781
        %1223 = vmatpush1.msra.mxu0 %v780
        %1224 = vmatprep.subr.mxu0 %v787
        %1225 = vmatpush1.msra.mxu0 %v786
        %1226 = vmatprep.subr.mxu0 %v793
        %1227 = vmatpush1.msra.mxu0 %v792
        %1228 = vmatprep.subr.mxu0 %v799
        %1229 = vmatpush1.msra.mxu0 %v798
        %1230 = vmatprep.subr.mxu0 %v827
        %1231 = vmatpush1.msra.mxu0 %v824
        %1232 = vmatprep.subr.mxu0 0.0
        %1233 = vmatpush1.msra.mxu0 0.0
        %1234 = vmatprep.subr.mxu0 0.0
        %1235 = vmatpush1.msra.mxu0 0.0
        %1236 = vmatprep.subr.mxu0 0.0
        %1237 = vmatpush1.msra.mxu0 0.0
        %1238 = vmatprep.subr.mxu0 0.0
        %1239 = vmatpush1.msra.mxu0 0.0
        %1240 = vmatprep.subr.mxu0 0.0
        %1241 = vmatpush1.msra.mxu0 0.0
        %1242 = vmatprep.subr.mxu0 0.0
        %1243 = vmatpush1.msra.mxu0 0.0
        %1244 = vmatprep.subr.mxu0 0.0
        %1245 = vmatpush1.msra.mxu0 0.0
        %1246 = vmatprep.subr.mxu0 0.0
        %1247 = vmatpush1.msra.mxu0 0.0
        %1248 = vmatprep.mubr.f32.mxu0 %v808
        %1249 = vmatmul.mubr.f32.gmra.mrb[0].mxu0 %v468
        %v1250 = vpop.f32.mrb[0].mxu0
        %v1251 = vadd.f32 %v1180, %v1250
        %v1252 = vpop.f32.mrb[0].mxu0
        %v1253 = vadd.f32 %v1182, %v1252
        %1254 = vdwg.mxu0
        %1255 = vst [vmem:[%s444] sm:$0xff] %v967
        %1256 = vst [vmem:[%s451] sm:$0xff] %v969
        %v1257 = vld [vmem:[%s399] sm:$0xff]
        %v1258 = vld [vmem:[%s399 + $0x8] sm:$0xff]
        %v1259 = vld [vmem:[%s399 + $0x10] sm:$0xff]
        %v1260 = vld [vmem:[#allocation8] sm:$0x7]
        %v1261 = vld [vmem:[#allocation9] sm:$0x7]
        %v1262 = vadd.f32 %v1257, %v1258
        %v1263 = vadd.f32 %v1262, %v1259
        %1264 = vadd.xlane.f32.xlu0 %v1263
        %v1265 = vpop.xlane.xlu0 %1264
        %v1266 = vrcp.pop 384.0
        %v1267 = vmul.f32 %v1265, %v1266
        %v1268 = vsub.f32 %v1257, %v1267
        %v1269 = vsub.f32 %v1258, %v1267
        %v1270 = vsub.f32 %v1259, %v1267
        %v1271 = vmul.f32 %v1268, %v1268
        %v1272 = vmul.f32 %v1269, %v1269
        %v1273 = vmul.f32 %v1270, %v1270
        %v1274 = vadd.f32 %v1271, %v1272
        %v1275 = vadd.f32 %v1274, %v1273
        %1276 = vadd.xlane.f32.xlu0 %v1275
        %v1277 = vpop.xlane.xlu0 %1276
        %v1278 = vmul.f32 %v1277, %v1266
        %v1279 = vadd.f32 %v1278, 1e-05
        %v1280 = vrsqrt.pop %v1279
        %v1281 = vmul.f32 %v1268, %v1280
        %v1282 = vmul.f32 %v1269, %v1280
        %v1283 = vmul.f32 %v1270, %v1280
        %v1285 = vlaneseq
        %v1286 = vshrl.u32 %v1285, 7
        %v1287 = vsub.s32 0, %v1286
        %v1288 = vrot.slane %v1260, %v1287
        %v1289 = vlaneseq
        %v1290 = vshrl.u32 %v1289, 7
        %v1291 = vsub.s32 1, %v1290
        %v1292 = vrot.slane %v1260, %v1291
        %v1293 = vlaneseq
        %v1294 = vshrl.u32 %v1293, 7
        %v1295 = vsub.s32 2, %v1294
        %v1296 = vrot.slane %v1260, %v1295
        %v1300 = vmul.f32 %v1281, %v1288
        %v1301 = vmul.f32 %v1282, %v1292
        %v1302 = vmul.f32 %v1283, %v1296
        %v1304 = vlaneseq
        %v1305 = vshrl.u32 %v1304, 7
        %v1306 = vsub.s32 0, %v1305
        %v1307 = vrot.slane %v1261, %v1306
        %v1308 = vlaneseq
        %v1309 = vshrl.u32 %v1308, 7
        %v1310 = vsub.s32 1, %v1309
        %v1311 = vrot.slane %v1261, %v1310
        %v1312 = vlaneseq
        %v1313 = vshrl.u32 %v1312, 7
        %v1314 = vsub.s32 2, %v1313
        %v1315 = vrot.slane %v1261, %v1314
        %v1319 = vadd.f32 %v1300, %v1307
        %v1320 = vadd.f32 %v1301, %v1311
        %v1321 = vadd.f32 %v1302, %v1315
        %v1322 = vld [vmem:[#allocation11] sm:$0xff]
        %v1323 = vld [vmem:[#allocation11 + $0x8] sm:$0xff]
        %v1324 = vld [vmem:[#allocation11 + $0x10] sm:$0xff]
        %v1325 = vld [vmem:[#allocation11 + $0x18] sm:$0xff]
        %v1326 = vld [vmem:[#allocation11 + $0x20] sm:$0xff]
        %v1327 = vld [vmem:[#allocation11 + $0x28] sm:$0xff]
        %v1328 = vld [vmem:[#allocation11 + $0x30] sm:$0xff]
        %v1329 = vld [vmem:[#allocation11 + $0x38] sm:$0xff]
        %v1330 = vld [vmem:[#allocation11 + $0x40] sm:$0xff]
        %v1331 = vld [vmem:[#allocation11 + $0x48] sm:$0xff]
        %v1332 = vld [vmem:[#allocation11 + $0x50] sm:$0xff]
        %v1333 = vld [vmem:[#allocation11 + $0x58] sm:$0xff]
        %v1334 = vld [vmem:[#allocation11 + $0x60] sm:$0xff]
        %v1335 = vld [vmem:[#allocation11 + $0x68] sm:$0xff]
        %v1336 = vld [vmem:[#allocation11 + $0x70] sm:$0xff]
        %v1337 = vld [vmem:[#allocation11 + $0x78] sm:$0xff]
        %v1338 = vld [vmem:[#allocation11 + $0x80] sm:$0xff]
        %v1339 = vld [vmem:[#allocation11 + $0x88] sm:$0xff]
        %v1340 = vld [vmem:[#allocation11 + $0x90] sm:$0xff]
        %v1341 = vld [vmem:[#allocation11 + $0x98] sm:$0xff]
        %v1342 = vld [vmem:[#allocation11 + $0xa0] sm:$0xff]
        %v1343 = vld [vmem:[#allocation11 + $0xa8] sm:$0xff]
        %v1344 = vld [vmem:[#allocation11 + $0xb0] sm:$0xff]
        %v1345 = vld [vmem:[#allocation11 + $0xb8] sm:$0xff]
        %v1346 = vld [vmem:[#allocation11 + $0xc0] sm:$0xff]
        %v1347 = vld [vmem:[#allocation11 + $0xc8] sm:$0xff]
        %v1348 = vld [vmem:[#allocation11 + $0xd0] sm:$0xff]
        %v1349 = vld [vmem:[#allocation11 + $0xd8] sm:$0xff]
        %v1350 = vld [vmem:[#allocation11 + $0xe0] sm:$0xff]
        %v1351 = vld [vmem:[#allocation11 + $0xe8] sm:$0xff]
        %v1352 = vld [vmem:[#allocation11 + $0xf0] sm:$0xff]
        %v1353 = vld [vmem:[#allocation11 + $0xf8] sm:$0xff]
        %v1354 = vld [vmem:[#allocation11 + $0x100] sm:$0xff]
        %v1355 = vld [vmem:[#allocation11 + $0x108] sm:$0xff]
        %v1356 = vld [vmem:[#allocation11 + $0x110] sm:$0xff]
        %v1357 = vld [vmem:[#allocation11 + $0x118] sm:$0xff]
        %v1358 = vld [vmem:[#allocation11 + $0x120] sm:$0xff]
        %v1359 = vld [vmem:[#allocation11 + $0x128] sm:$0xff]
        %v1360 = vld [vmem:[#allocation11 + $0x130] sm:$0xff]
        %v1361 = vld [vmem:[#allocation11 + $0x138] sm:$0xff]
        %v1362 = vld [vmem:[#allocation11 + $0x140] sm:$0xff]
        %v1363 = vld [vmem:[#allocation11 + $0x148] sm:$0xff]
        %v1364 = vld [vmem:[#allocation11 + $0x150] sm:$0xff]
        %v1365 = vld [vmem:[#allocation11 + $0x158] sm:$0xff]
        %v1366 = vld [vmem:[#allocation11 + $0x160] sm:$0xff]
        %v1367 = vld [vmem:[#allocation11 + $0x168] sm:$0xff]
        %v1368 = vld [vmem:[#allocation11 + $0x170] sm:$0xff]
        %v1369 = vld [vmem:[#allocation11 + $0x178] sm:$0xff]
        %v1370 = vld [vmem:[#allocation11 + $0x180] sm:$0xff]
        %v1371 = vld [vmem:[#allocation11 + $0x188] sm:$0xff]
        %v1372 = vld [vmem:[#allocation11 + $0x190] sm:$0xff]
        %v1373 = vld [vmem:[#allocation11 + $0x198] sm:$0xff]
        %v1374 = vld [vmem:[#allocation11 + $0x1a0] sm:$0xff]
        %v1375 = vld [vmem:[#allocation11 + $0x1a8] sm:$0xff]
        %v1376 = vld [vmem:[#allocation11 + $0x1b0] sm:$0xff]
        %v1377 = vld [vmem:[#allocation11 + $0x1b8] sm:$0xff]
        %v1378 = vld [vmem:[#allocation11 + $0x1c0] sm:$0xff]
        %v1379 = vld [vmem:[#allocation11 + $0x1c8] sm:$0xff]
        %v1380 = vld [vmem:[#allocation11 + $0x1d0] sm:$0xff]
        %v1381 = vld [vmem:[#allocation11 + $0x1d8] sm:$0xff]
        %v1382 = vld [vmem:[#allocation11 + $0x1e0] sm:$0xff]
        %v1383 = vld [vmem:[#allocation11 + $0x1e8] sm:$0xff]
        %v1384 = vld [vmem:[#allocation11 + $0x1f0] sm:$0xff]
        %v1385 = vld [vmem:[#allocation11 + $0x1f8] sm:$0xff]
        %v1386 = vld [vmem:[#allocation11 + $0x200] sm:$0xff]
        %v1387 = vld [vmem:[#allocation11 + $0x208] sm:$0xff]
        %v1388 = vld [vmem:[#allocation11 + $0x210] sm:$0xff]
        %v1389 = vld [vmem:[#allocation11 + $0x218] sm:$0xff]
        %v1390 = vld [vmem:[#allocation11 + $0x220] sm:$0xff]
        %v1391 = vld [vmem:[#allocation11 + $0x228] sm:$0xff]
        %v1392 = vld [vmem:[#allocation11 + $0x230] sm:$0xff]
        %v1393 = vld [vmem:[#allocation11 + $0x238] sm:$0xff]
        %v1394 = vld [vmem:[#allocation11 + $0x240] sm:$0xff]
        %v1395 = vld [vmem:[#allocation11 + $0x248] sm:$0xff]
        %v1396 = vld [vmem:[#allocation11 + $0x250] sm:$0xff]
        %v1397 = vld [vmem:[#allocation11 + $0x258] sm:$0xff]
        %v1398 = vld [vmem:[#allocation11 + $0x260] sm:$0xff]
        %v1399 = vld [vmem:[#allocation11 + $0x268] sm:$0xff]
        %v1400 = vld [vmem:[#allocation11 + $0x270] sm:$0xff]
        %v1401 = vld [vmem:[#allocation11 + $0x278] sm:$0xff]
        %v1402 = vld [vmem:[#allocation11 + $0x280] sm:$0xff]
        %v1403 = vld [vmem:[#allocation11 + $0x288] sm:$0xff]
        %v1404 = vld [vmem:[#allocation11 + $0x290] sm:$0xff]
        %v1405 = vld [vmem:[#allocation11 + $0x298] sm:$0xff]
        %v1406 = vld [vmem:[#allocation11 + $0x2a0] sm:$0xff]
        %v1407 = vld [vmem:[#allocation11 + $0x2a8] sm:$0xff]
        %v1408 = vld [vmem:[#allocation11 + $0x2b0] sm:$0xff]
        %v1409 = vld [vmem:[#allocation11 + $0x2b8] sm:$0xff]
        %v1410 = vld [vmem:[#allocation11 + $0x2c0] sm:$0xff]
        %v1411 = vld [vmem:[#allocation11 + $0x2c8] sm:$0xff]
        %v1412 = vld [vmem:[#allocation11 + $0x2d0] sm:$0xff]
        %v1413 = vld [vmem:[#allocation11 + $0x2d8] sm:$0xff]
        %v1414 = vld [vmem:[#allocation11 + $0x2e0] sm:$0xff]
        %v1415 = vld [vmem:[#allocation11 + $0x2e8] sm:$0xff]
        %v1416 = vld [vmem:[#allocation11 + $0x2f0] sm:$0xff]
        %v1417 = vld [vmem:[#allocation11 + $0x2f8] sm:$0xff]
        %v1418 = vld [vmem:[#allocation11 + $0x300] sm:$0xff]
        %v1419 = vld [vmem:[#allocation11 + $0x308] sm:$0xff]
        %v1420 = vld [vmem:[#allocation11 + $0x310] sm:$0xff]
        %v1421 = vld [vmem:[#allocation11 + $0x318] sm:$0xff]
        %v1422 = vld [vmem:[#allocation11 + $0x320] sm:$0xff]
        %v1423 = vld [vmem:[#allocation11 + $0x328] sm:$0xff]
        %v1424 = vld [vmem:[#allocation11 + $0x330] sm:$0xff]
        %v1425 = vld [vmem:[#allocation11 + $0x338] sm:$0xff]
        %v1426 = vld [vmem:[#allocation11 + $0x340] sm:$0xff]
        %v1427 = vld [vmem:[#allocation11 + $0x348] sm:$0xff]
        %v1428 = vld [vmem:[#allocation11 + $0x350] sm:$0xff]
        %v1429 = vld [vmem:[#allocation11 + $0x358] sm:$0xff]
        %v1430 = vld [vmem:[#allocation11 + $0x360] sm:$0xff]
        %v1431 = vld [vmem:[#allocation11 + $0x368] sm:$0xff]
        %v1432 = vld [vmem:[#allocation11 + $0x370] sm:$0xff]
        %v1433 = vld [vmem:[#allocation11 + $0x378] sm:$0xff]
        %v1434 = vld [vmem:[#allocation11 + $0x380] sm:$0xff]
        %v1435 = vld [vmem:[#allocation11 + $0x388] sm:$0xff]
        %v1436 = vld [vmem:[#allocation11 + $0x390] sm:$0xff]
        %v1437 = vld [vmem:[#allocation11 + $0x398] sm:$0xff]
        %v1438 = vld [vmem:[#allocation11 + $0x3a0] sm:$0xff]
        %v1439 = vld [vmem:[#allocation11 + $0x3a8] sm:$0xff]
        %v1440 = vld [vmem:[#allocation11 + $0x3b0] sm:$0xff]
        %v1441 = vld [vmem:[#allocation11 + $0x3b8] sm:$0xff]
        %v1442 = vld [vmem:[#allocation11 + $0x3c0] sm:$0xff]
        %v1443 = vld [vmem:[#allocation11 + $0x3c8] sm:$0xff]
        %v1444 = vld [vmem:[#allocation11 + $0x3d0] sm:$0xff]
        %v1445 = vld [vmem:[#allocation11 + $0x3d8] sm:$0xff]
        %v1446 = vld [vmem:[#allocation11 + $0x3e0] sm:$0xff]
        %v1447 = vld [vmem:[#allocation11 + $0x3e8] sm:$0xff]
        %v1448 = vld [vmem:[#allocation11 + $0x3f0] sm:$0xff]
        %v1449 = vld [vmem:[#allocation11 + $0x3f8] sm:$0xff]
        %v1450 = vld [vmem:[#allocation11 + $0x400] sm:$0xff]
        %v1451 = vld [vmem:[#allocation11 + $0x408] sm:$0xff]
        %v1452 = vld [vmem:[#allocation11 + $0x410] sm:$0xff]
        %v1453 = vld [vmem:[#allocation11 + $0x418] sm:$0xff]
        %v1454 = vld [vmem:[#allocation11 + $0x420] sm:$0xff]
        %v1455 = vld [vmem:[#allocation11 + $0x428] sm:$0xff]
        %v1456 = vld [vmem:[#allocation11 + $0x430] sm:$0xff]
        %v1457 = vld [vmem:[#allocation11 + $0x438] sm:$0xff]
        %v1458 = vld [vmem:[#allocation11 + $0x440] sm:$0xff]
        %v1459 = vld [vmem:[#allocation11 + $0x448] sm:$0xff]
        %v1460 = vld [vmem:[#allocation11 + $0x450] sm:$0xff]
        %v1461 = vld [vmem:[#allocation11 + $0x458] sm:$0xff]
        %v1462 = vld [vmem:[#allocation11 + $0x460] sm:$0xff]
        %v1463 = vld [vmem:[#allocation11 + $0x468] sm:$0xff]
        %v1464 = vld [vmem:[#allocation11 + $0x470] sm:$0xff]
        %v1465 = vld [vmem:[#allocation11 + $0x478] sm:$0xff]
        %1466 = vmatprep.subr.mxu0 %v1323
        %1467 = vmatpush1.msra.mxu0 %v1322
        %1468 = vmatprep.subr.mxu0 %v1326
        %1469 = vmatpush1.msra.mxu0 %v1325
        %1470 = vmatprep.subr.mxu0 %v1329
        %1471 = vmatpush1.msra.mxu0 %v1328
        %1472 = vmatprep.subr.mxu0 %v1332
        %1473 = vmatpush1.msra.mxu0 %v1331
        %1474 = vmatprep.subr.mxu0 %v1335
        %1475 = vmatpush1.msra.mxu0 %v1334
        %1476 = vmatprep.subr.mxu0 %v1338
        %1477 = vmatpush1.msra.mxu0 %v1337
        %1478 = vmatprep.subr.mxu0 %v1341
        %1479 = vmatpush1.msra.mxu0 %v1340
        %1480 = vmatprep.subr.mxu0 %v1344
        %1481 = vmatpush1.msra.mxu0 %v1343
        %1482 = vmatprep.subr.mxu0 %v1347
        %1483 = vmatpush1.msra.mxu0 %v1346
        %1484 = vmatprep.subr.mxu0 %v1350
        %1485 = vmatpush1.msra.mxu0 %v1349
        %1486 = vmatprep.subr.mxu0 %v1353
        %1487 = vmatpush1.msra.mxu0 %v1352
        %1488 = vmatprep.subr.mxu0 %v1356
        %1489 = vmatpush1.msra.mxu0 %v1355
        %1490 = vmatprep.subr.mxu0 %v1359
        %1491 = vmatpush1.msra.mxu0 %v1358
        %1492 = vmatprep.subr.mxu0 %v1362
        %1493 = vmatpush1.msra.mxu0 %v1361
        %1494 = vmatprep.subr.mxu0 %v1365
        %1495 = vmatpush1.msra.mxu0 %v1364
        %1496 = vmatprep.subr.mxu0 %v1368
        %1497 = vmatpush1.msra.mxu0 %v1367
        %1498 = vmatprep.subr.mxu0 %v1371
        %1499 = vmatpush1.msra.mxu0 %v1370
        %1500 = vmatprep.subr.mxu0 %v1374
        %1501 = vmatpush1.msra.mxu0 %v1373
        %1502 = vmatprep.subr.mxu0 %v1377
        %1503 = vmatpush1.msra.mxu0 %v1376
        %1504 = vmatprep.subr.mxu0 %v1380
        %1505 = vmatpush1.msra.mxu0 %v1379
        %1506 = vmatprep.subr.mxu0 %v1383
        %1507 = vmatpush1.msra.mxu0 %v1382
        %1508 = vmatprep.subr.mxu0 %v1386
        %1509 = vmatpush1.msra.mxu0 %v1385
        %1510 = vmatprep.subr.mxu0 %v1389
        %1511 = vmatpush1.msra.mxu0 %v1388
        %1512 = vmatprep.subr.mxu0 %v1392
        %1513 = vmatpush1.msra.mxu0 %v1391
        %1514 = vmatprep.subr.mxu0 %v1395
        %1515 = vmatpush1.msra.mxu0 %v1394
        %1516 = vmatprep.subr.mxu0 %v1398
        %1517 = vmatpush1.msra.mxu0 %v1397
        %1518 = vmatprep.subr.mxu0 %v1401
        %1519 = vmatpush1.msra.mxu0 %v1400
        %1520 = vmatprep.subr.mxu0 %v1404
        %1521 = vmatpush1.msra.mxu0 %v1403
        %1522 = vmatprep.subr.mxu0 %v1407
        %1523 = vmatpush1.msra.mxu0 %v1406
        %1524 = vmatprep.subr.mxu0 %v1410
        %1525 = vmatpush1.msra.mxu0 %v1409
        %1526 = vmatprep.subr.mxu0 %v1413
        %1527 = vmatpush1.msra.mxu0 %v1412
        %1528 = vmatprep.subr.mxu0 %v1416
        %1529 = vmatpush1.msra.mxu0 %v1415
        %1530 = vmatprep.mubr.f32.mxu0 %v1320
        %1531 = vmatmul.mubr.f32.gmra.mrb[0].mxu0 %v1319
        %v1532 = vpop.f32.mrb[0].mxu0
        %v1533 = vadd.f32 0.0, %v1532
        %v1534 = vpop.f32.mrb[0].mxu0
        %v1535 = vadd.f32 0.0, %v1534
        %1536 = vdwg.mxu0
        %1537 = vmatprep.subr.mxu0 %v1419
        %1538 = vmatpush1.msra.mxu0 %v1418
        %1539 = vmatprep.subr.mxu0 %v1422
        %1540 = vmatpush1.msra.mxu0 %v1421
        %1541 = vmatprep.subr.mxu0 %v1425
        %1542 = vmatpush1.msra.mxu0 %v1424
        %1543 = vmatprep.subr.mxu0 %v1428
        %1544 = vmatpush1.msra.mxu0 %v1427
        %1545 = vmatprep.subr.mxu0 %v1431
        %1546 = vmatpush1.msra.mxu0 %v1430
        %1547 = vmatprep.subr.mxu0 %v1434
        %1548 = vmatpush1.msra.mxu0 %v1433
        %1549 = vmatprep.subr.mxu0 %v1437
        %1550 = vmatpush1.msra.mxu0 %v1436
        %1551 = vmatprep.subr.mxu0 %v1440
        %1552 = vmatpush1.msra.mxu0 %v1439
        %1553 = vmatprep.subr.mxu0 %v1443
        %1554 = vmatpush1.msra.mxu0 %v1442
        %1555 = vmatprep.subr.mxu0 %v1446
        %1556 = vmatpush1.msra.mxu0 %v1445
        %1557 = vmatprep.subr.mxu0 %v1449
        %1558 = vmatpush1.msra.mxu0 %v1448
        %1559 = vmatprep.subr.mxu0 %v1452
        %1560 = vmatpush1.msra.mxu0 %v1451
        %1561 = vmatprep.subr.mxu0 %v1455
        %1562 = vmatpush1.msra.mxu0 %v1454
        %1563 = vmatprep.subr.mxu0 %v1458
        %1564 = vmatpush1.msra.mxu0 %v1457
        %1565 = vmatprep.subr.mxu0 %v1461
        %1566 = vmatpush1.msra.mxu0 %v1460
        %1567 = vmatprep.subr.mxu0 %v1464
        %1568 = vmatpush1.msra.mxu0 %v1463
        %1569 = vmatprep.subr.mxu0 0.0
        %1570 = vmatpush1.msra.mxu0 0.0
        %1571 = vmatprep.subr.mxu0 0.0
        %1572 = vmatpush1.msra.mxu0 0.0
        %1573 = vmatprep.subr.mxu0 0.0
        %1574 = vmatpush1.msra.mxu0 0.0
        %1575 = vmatprep.subr.mxu0 0.0
        %1576 = vmatpush1.msra.mxu0 0.0
        %1577 = vmatprep.subr.mxu0 0.0
        %1578 = vmatpush1.msra.mxu0 0.0
        %1579 = vmatprep.subr.mxu0 0.0
        %1580 = vmatpush1.msra.mxu0 0.0
        %1581 = vmatprep.subr.mxu0 0.0
        %1582 = vmatpush1.msra.mxu0 0.0
        %1583 = vmatprep.subr.mxu0 0.0
        %1584 = vmatpush1.msra.mxu0 0.0
        %1585 = vmatprep.subr.mxu0 0.0
        %1586 = vmatpush1.msra.mxu0 0.0
        %1587 = vmatprep.subr.mxu0 0.0
        %1588 = vmatpush1.msra.mxu0 0.0
        %1589 = vmatprep.subr.mxu0 0.0
        %1590 = vmatpush1.msra.mxu0 0.0
        %1591 = vmatprep.subr.mxu0 0.0
        %1592 = vmatpush1.msra.mxu0 0.0
        %1593 = vmatprep.subr.mxu0 0.0
        %1594 = vmatpush1.msra.mxu0 0.0
        %1595 = vmatprep.subr.mxu0 0.0
        %1596 = vmatpush1.msra.mxu0 0.0
        %1597 = vmatprep.subr.mxu0 0.0
        %1598 = vmatpush1.msra.mxu0 0.0
        %1599 = vmatprep.subr.mxu0 0.0
        %1600 = vmatpush1.msra.mxu0 0.0
        %1601 = vmatprep.mubr.f32.mxu0 0.0
        %1602 = vmatmul.mubr.f32.gmra.mrb[0].mxu0 %v1321
        %v1603 = vpop.f32.mrb[0].mxu0
        %v1604 = vadd.f32 %v1533, %v1603
        %v1605 = vpop.f32.mrb[0].mxu0
        %v1606 = vadd.f32 %v1535, %v1605
        %1607 = vdwg.mxu0
        %1608 = vmatprep.subr.mxu0 0.0
        %1609 = vmatpush1.msra.mxu0 %v1324
        %1610 = vmatprep.subr.mxu0 0.0
        %1611 = vmatpush1.msra.mxu0 %v1327
        %1612 = vmatprep.subr.mxu0 0.0
        %1613 = vmatpush1.msra.mxu0 %v1330
        %1614 = vmatprep.subr.mxu0 0.0
        %1615 = vmatpush1.msra.mxu0 %v1333
        %1616 = vmatprep.subr.mxu0 0.0
        %1617 = vmatpush1.msra.mxu0 %v1336
        %1618 = vmatprep.subr.mxu0 0.0
        %1619 = vmatpush1.msra.mxu0 %v1339
        %1620 = vmatprep.subr.mxu0 0.0
        %1621 = vmatpush1.msra.mxu0 %v1342
        %1622 = vmatprep.subr.mxu0 0.0
        %1623 = vmatpush1.msra.mxu0 %v1345
        %1624 = vmatprep.subr.mxu0 0.0
        %1625 = vmatpush1.msra.mxu0 %v1348
        %1626 = vmatprep.subr.mxu0 0.0
        %1627 = vmatpush1.msra.mxu0 %v1351
        %1628 = vmatprep.subr.mxu0 0.0
        %1629 = vmatpush1.msra.mxu0 %v1354
        %1630 = vmatprep.subr.mxu0 0.0
        %1631 = vmatpush1.msra.mxu0 %v1357
        %1632 = vmatprep.subr.mxu0 0.0
        %1633 = vmatpush1.msra.mxu0 %v1360
        %1634 = vmatprep.subr.mxu0 0.0
        %1635 = vmatpush1.msra.mxu0 %v1363
        %1636 = vmatprep.subr.mxu0 0.0
        %1637 = vmatpush1.msra.mxu0 %v1366
        %1638 = vmatprep.subr.mxu0 0.0
        %1639 = vmatpush1.msra.mxu0 %v1369
        %1640 = vmatprep.subr.mxu0 0.0
        %1641 = vmatpush1.msra.mxu0 %v1372
        %1642 = vmatprep.subr.mxu0 0.0
        %1643 = vmatpush1.msra.mxu0 %v1375
        %1644 = vmatprep.subr.mxu0 0.0
        %1645 = vmatpush1.msra.mxu0 %v1378
        %1646 = vmatprep.subr.mxu0 0.0
        %1647 = vmatpush1.msra.mxu0 %v1381
        %1648 = vmatprep.subr.mxu0 0.0
        %1649 = vmatpush1.msra.mxu0 %v1384
        %1650 = vmatprep.subr.mxu0 0.0
        %1651 = vmatpush1.msra.mxu0 %v1387
        %1652 = vmatprep.subr.mxu0 0.0
        %1653 = vmatpush1.msra.mxu0 %v1390
        %1654 = vmatprep.subr.mxu0 0.0
        %1655 = vmatpush1.msra.mxu0 %v1393
        %1656 = vmatprep.subr.mxu0 0.0
        %1657 = vmatpush1.msra.mxu0 %v1396
        %1658 = vmatprep.subr.mxu0 0.0
        %1659 = vmatpush1.msra.mxu0 %v1399
        %1660 = vmatprep.subr.mxu0 0.0
        %1661 = vmatpush1.msra.mxu0 %v1402
        %1662 = vmatprep.subr.mxu0 0.0
        %1663 = vmatpush1.msra.mxu0 %v1405
        %1664 = vmatprep.subr.mxu0 0.0
        %1665 = vmatpush1.msra.mxu0 %v1408
        %1666 = vmatprep.subr.mxu0 0.0
        %1667 = vmatpush1.msra.mxu0 %v1411
        %1668 = vmatprep.subr.mxu0 0.0
        %1669 = vmatpush1.msra.mxu0 %v1414
        %1670 = vmatprep.subr.mxu0 0.0
        %1671 = vmatpush1.msra.mxu0 %v1417
        %1672 = vmatprep.mubr.f32.mxu0 %v1320
        %1673 = vmatmul.mubr.f32.gmra.mrb[0].mxu0 %v1319
        %v1674 = vpop.f32.mrb[0].mxu0
        %v1675 = vadd.f32 0.0, %v1674
        %v1676 = vpop.f32.mrb[0].mxu0
        %1677 = vdwg.mxu0
        %1678 = vmatprep.subr.mxu0 0.0
        %1679 = vmatpush1.msra.mxu0 %v1420
        %1680 = vmatprep.subr.mxu0 0.0
        %1681 = vmatpush1.msra.mxu0 %v1423
        %1682 = vmatprep.subr.mxu0 0.0
        %1683 = vmatpush1.msra.mxu0 %v1426
        %1684 = vmatprep.subr.mxu0 0.0
        %1685 = vmatpush1.msra.mxu0 %v1429
        %1686 = vmatprep.subr.mxu0 0.0
        %1687 = vmatpush1.msra.mxu0 %v1432
        %1688 = vmatprep.subr.mxu0 0.0
        %1689 = vmatpush1.msra.mxu0 %v1435
        %1690 = vmatprep.subr.mxu0 0.0
        %1691 = vmatpush1.msra.mxu0 %v1438
        %1692 = vmatprep.subr.mxu0 0.0
        %1693 = vmatpush1.msra.mxu0 %v1441
        %1694 = vmatprep.subr.mxu0 0.0
        %1695 = vmatpush1.msra.mxu0 %v1444
        %1696 = vmatprep.subr.mxu0 0.0
        %1697 = vmatpush1.msra.mxu0 %v1447
        %1698 = vmatprep.subr.mxu0 0.0
        %1699 = vmatpush1.msra.mxu0 %v1450
        %1700 = vmatprep.subr.mxu0 0.0
        %1701 = vmatpush1.msra.mxu0 %v1453
        %1702 = vmatprep.subr.mxu0 0.0
        %1703 = vmatpush1.msra.mxu0 %v1456
        %1704 = vmatprep.subr.mxu0 0.0
        %1705 = vmatpush1.msra.mxu0 %v1459
        %1706 = vmatprep.subr.mxu0 0.0
        %1707 = vmatpush1.msra.mxu0 %v1462
        %1708 = vmatprep.subr.mxu0 0.0
        %1709 = vmatpush1.msra.mxu0 %v1465
        %1710 = vmatprep.subr.mxu0 0.0
        %1711 = vmatpush1.msra.mxu0 0.0
        %1712 = vmatprep.subr.mxu0 0.0
        %1713 = vmatpush1.msra.mxu0 0.0
        %1714 = vmatprep.subr.mxu0 0.0
        %1715 = vmatpush1.msra.mxu0 0.0
        %1716 = vmatprep.subr.mxu0 0.0
        %1717 = vmatpush1.msra.mxu0 0.0
        %1718 = vmatprep.subr.mxu0 0.0
        %1719 = vmatpush1.msra.mxu0 0.0
        %1720 = vmatprep.subr.mxu0 0.0
        %1721 = vmatpush1.msra.mxu0 0.0
        %1722 = vmatprep.subr.mxu0 0.0
        %1723 = vmatpush1.msra.mxu0 0.0
        %1724 = vmatprep.subr.mxu0 0.0
        %1725 = vmatpush1.msra.mxu0 0.0
        %1726 = vmatprep.subr.mxu0 0.0
        %1727 = vmatpush1.msra.mxu0 0.0
        %1728 = vmatprep.subr.mxu0 0.0
        %1729 = vmatpush1.msra.mxu0 0.0
        %1730 = vmatprep.subr.mxu0 0.0
        %1731 = vmatpush1.msra.mxu0 0.0
        %1732 = vmatprep.subr.mxu0 0.0
        %1733 = vmatpush1.msra.mxu0 0.0
        %1734 = vmatprep.subr.mxu0 0.0
        %1735 = vmatpush1.msra.mxu0 0.0
        %1736 = vmatprep.subr.mxu0 0.0
        %1737 = vmatpush1.msra.mxu0 0.0
        %1738 = vmatprep.subr.mxu0 0.0
        %1739 = vmatpush1.msra.mxu0 0.0
        %1740 = vmatprep.subr.mxu0 0.0
        %1741 = vmatpush1.msra.mxu0 0.0
        %1742 = vmatprep.mubr.f32.mxu0 0.0
        %1743 = vmatmul.mubr.f32.gmra.mrb[0].mxu0 %v1321
        %v1744 = vpop.f32.mrb[0].mxu0
        %v1745 = vadd.f32 %v1675, %v1744
        %v1746 = vpop.f32.mrb[0].mxu0
        %1747 = vdwg.mxu0
        %v1748 = vadd.f32 %v1109, %v1604
        %v1749 = vadd.f32 %v1111, %v1606
        %v1750 = vadd.f32 %v1251, %v1745
        %1751 = vst [vmem:[%s458] sm:$0xff] %v1748
        %1752 = vst [vmem:[%s458 + $0x8] sm:$0xff] %v1749
        %1753 = vst [vmem:[%s458 + $0x10] sm:$0xff] %v1750
        %1754 = vst [vmem:[%s465] sm:$0xff] %v1253
        %s1755 = sand.u32 %s179, 1
        %s1756 = scalar_lea.sflag [#allocation4], %s1755
        %s1757 = sand.u32 %s179, 1
        %s1758 = smul.addr %s1757, 8
        %s1759 = scalar_lea.vmem [#allocation12], %s1758
        %s1760 = sand.u32 %s35, 1
        %s1761 = scalar_lea.sflag [#allocation14], %s1760
        %s1762 = sand.u32 %s205, 1
        %s1763 = smul.addr %s1762, 8
        %s1764 = scalar_lea.vmem [#allocation13], %s1763
        %s1765 = sand.u32 %s35, 1
        %s1766 = scalar_lea.sflag [#allocation14], %s1765
        %s1767 = sand.u32 %s231, 1
        %s1768 = smul.addr %s1767, 24
        %s1769 = scalar_lea.vmem [#allocation15], %s1768
        %s1770 = sand.u32 %s257, 1
        %s1771 = scalar_lea.sflag [#allocation17], %s1770
        %s1772 = sand.u32 %s257, 1
        %s1773 = smul.addr %s1772, 8
        %s1774 = scalar_lea.vmem [#allocation16], %s1773
        // Predicated region
        $region69: #{tpu_custom_call.1} parent=43 // pred_check
          %p1775 = pneg %p189
        $region70: #{tpu_custom_call.1} parent=43 // pred_check_branch
          %1777 = sbr.rel (%p1775) target = $region72
        $region71: #{tpu_custom_call.1} parent=43 // pred_region
          %s1779 = ssub.s32 128, 128
          %1780 = vsyncadd %s1756, %s1779
          %s1781 = smul.addr %s35, 128
          %s1782 = scalar_lea.hbm %s6, %s1781
          %s1784 = sshll.u32 %s1759, 4
          %s1785 = int_to_ptr.vmem [resolvable:$true] %s1784
          %1787 = dma.vmem_to_hbm [thread:$0]  %s1785, 128, %s1782, %s1756
        $region72: #{tpu_custom_call.1} parent=43 // pred_fallthru
          _
        // Predicated region
        $region73: #{tpu_custom_call.1} parent=43 // pred_check
          %p1788 = pneg %p215
        $region74: #{tpu_custom_call.1} parent=43 // pred_check_branch
          %1790 = sbr.rel (%p1788) target = $region76
        $region75: #{tpu_custom_call.1} parent=43 // pred_region
          %s1792 = ssub.s32 128, 128
          %1793 = vsyncadd %s1761, %s1792
          %s1794 = smul.addr %s35, 128
          %s1795 = scalar_lea.hbm %s7, %s1794
          %s1797 = sshll.u32 %s1764, 4
          %s1798 = int_to_ptr.vmem [resolvable:$true] %s1797
          %1800 = dma.vmem_to_hbm [thread:$0]  %s1798, 128, %s1795, %s1761
        $region76: #{tpu_custom_call.1} parent=43 // pred_fallthru
          _
        // Predicated region
        $region77: #{tpu_custom_call.1} parent=43 // pred_check
          %p1801 = pneg %p241
        $region78: #{tpu_custom_call.1} parent=43 // pred_check_branch
          %1803 = sbr.rel (%p1801) target = $region80
        $region79: #{tpu_custom_call.1} parent=43 // pred_region
          %s1805 = ssub.s32 384, 384
          %1806 = vsyncadd %s1766, %s1805
          %s1807 = smul.addr %s35, 3
          %s1808 = smul.addr %s1807, 128
          %s1809 = scalar_lea.hbm %s8, %s1808
          %s1811 = sshll.u32 %s1769, 4
          %s1812 = int_to_ptr.vmem [resolvable:$true] %s1811
          %1814 = dma.vmem_to_hbm [thread:$0]  %s1812, 384, %s1809, %s1766
        $region80: #{tpu_custom_call.1} parent=43 // pred_fallthru
          _
        // Predicated region
        $region81: #{tpu_custom_call.1} parent=43 // pred_check
          %p1815 = pneg %p267
        $region82: #{tpu_custom_call.1} parent=43 // pred_check_branch
          %1817 = sbr.rel (%p1815) target = $region84
        $region83: #{tpu_custom_call.1} parent=43 // pred_region
          %s1819 = ssub.s32 128, 128
          %1820 = vsyncadd %s1771, %s1819
          %s1821 = smul.addr %s35, 128
          %s1822 = scalar_lea.hbm %s9, %s1821
          %s1824 = sshll.u32 %s1774, 4
          %s1825 = int_to_ptr.vmem [resolvable:$true] %s1824
          %1827 = dma.vmem_to_hbm [thread:$0]  %s1825, 128, %s1822, %s1771
        $region84: #{tpu_custom_call.1} parent=43 // pred_fallthru
          _
      $region44: #{tpu_custom_call.1} parent=5 // pred_fallthru
        _
      %p1828 = scmp.le.s32.totalorder 2, %s30
      // Predicated region
      $region85: #{tpu_custom_call.1} parent=5 // pred_check
        %p1829 = pneg %p1828
      $region86: #{tpu_custom_call.1} parent=5 // pred_check_branch
        %1831 = sbr.rel (%p1829) target = $region88
      $region87: #{tpu_custom_call.1} parent=5 // pred_region
        %s1832 = ssub.s32 %s30, 2
        // Predicated region
        $region89: #{tpu_custom_call.1} parent=87 // pred_check
          %p1833 = pneg %p195
        $region90: #{tpu_custom_call.1} parent=87 // pred_check_branch
          %1835 = sbr.rel (%p1833) target = $region92
        $region91: #{tpu_custom_call.1} parent=87 // pred_region
          %s1836 = sand.u32 %s180, 1
          %s1837 = scalar_lea.sflag [#allocation4], %s1836
          %s1838 = sand.u32 %s180, 1
          %s1839 = smul.addr %s1838, 8
          %s1840 = scalar_lea.vmem [#allocation12], %s1839
          %1841 = dma.done %s1837, 128
        $region92: #{tpu_custom_call.1} parent=87 // pred_fallthru
          _
        // Predicated region
        $region93: #{tpu_custom_call.1} parent=87 // pred_check
          %p1842 = pneg %p221
        $region94: #{tpu_custom_call.1} parent=87 // pred_check_branch
          %1844 = sbr.rel (%p1842) target = $region96
        $region95: #{tpu_custom_call.1} parent=87 // pred_region
          %s1845 = sand.u32 %s36, 1
          %s1846 = scalar_lea.sflag [#allocation14], %s1845
          %s1847 = sand.u32 %s206, 1
          %s1848 = smul.addr %s1847, 8
          %s1849 = scalar_lea.vmem [#allocation13], %s1848
          %1850 = dma.done %s1846, 128
        $region96: #{tpu_custom_call.1} parent=87 // pred_fallthru
          _
        // Predicated region
        $region97: #{tpu_custom_call.1} parent=87 // pred_check
          %p1851 = pneg %p247
        $region98: #{tpu_custom_call.1} parent=87 // pred_check_branch
          %1853 = sbr.rel (%p1851) target = $region100
        $region99: #{tpu_custom_call.1} parent=87 // pred_region
          %s1854 = sand.u32 %s36, 1
          %s1855 = scalar_lea.sflag [#allocation14], %s1854
          %s1856 = sand.u32 %s232, 1
          %s1857 = smul.addr %s1856, 24
          %s1858 = scalar_lea.vmem [#allocation15], %s1857
          %1859 = dma.done %s1855, 384
        $region100: #{tpu_custom_call.1} parent=87 // pred_fallthru
          _
        // Predicated region
        $region101: #{tpu_custom_call.1} parent=87 // pred_check
          %p1860 = pneg %p273
        $region102: #{tpu_custom_call.1} parent=87 // pred_check_branch
          %1862 = sbr.rel (%p1860) target = $region104
        $region103: #{tpu_custom_call.1} parent=87 // pred_region
          %s1863 = sand.u32 %s258, 1
          %s1864 = scalar_lea.sflag [#allocation17], %s1863
          %s1865 = sand.u32 %s258, 1
          %s1866 = smul.addr %s1865, 8
          %s1867 = scalar_lea.vmem [#allocation16], %s1866
          %1868 = dma.done %s1864, 128
        $region104: #{tpu_custom_call.1} parent=87 // pred_fallthru
          _
      $region88: #{tpu_custom_call.1} parent=5 // pred_fallthru
        _
    $region6: #{tpu_custom_call.1} parent=1 // loop_footer
      %s34 = sadd.s32 1, %s30
    $region7: #{tpu_custom_call.1} parent=1 // loop_footer_branch
      %29 = sbr.rel target = $region3
    $region8: #{tpu_custom_call.1} parent=1 // loop_exit
      _
    %1869 = vsyncpa [#allocation3], 1
    %s1870 = scalar_lea.sflag [#allocation3], 1
    %1871 = vsyncpa %s1870, 1
    %1872 = vsyncpa [#allocation6], 1
    %1873 = vsyncpa [#allocation10], 1
    %1874 = vsyncpa [#allocation4], 1
    %s1875 = scalar_lea.sflag [#allocation4], 1
    %1876 = vsyncpa %s1875, 1
    %1877 = vsyncpa [#allocation14], 1
    %s1878 = scalar_lea.sflag [#allocation14], 1
    %1879 = vsyncpa %s1878, 1
    %1880 = vsyncpa [#allocation17], 1
    %s1881 = scalar_lea.sflag [#allocation17], 1
    %1882 = vsyncpa %s1881, 1

</llo_original>
